<compile_context>
chip_gen: v5e
topology: v5e:2x2
jax: 0.10.0
libtpu: 0.0.40
codegen_flags: <defaults>
</compile_context>

<pallas_src>
import functools

import jax
import jax.numpy as jnp
from jax.experimental import pallas as pl
from jax.experimental.pallas import tpu as pltpu


_VMEM_LIMIT = 48 * 1024 * 1024  # explicit scoped-VMEM budget (fits v7x 64 MiB)


# ----------------------------- Pallas kernels ------------------------------


def _conv_tap_kernel(x_ref, w_ref, b_ref, o_ref, *, tap_offsets, negative_slope):
    """4x4 conv tile as 16 per-tap matmuls (bf16 in, fp32 accumulate).

    x_ref: (1, 1, L_all, Cin)   flattened parity-plane slabs (with halo rows)
    w_ref: (16, Cin, Cout)      per-tap weights (VMEM-resident)
    b_ref: (1, Cout)            fp32 bias
    o_ref: (1, 1, Lout, Cout)   flattened output tile (lane-dense Cout)
    """
    lout = o_ref.shape[2]
    cout = o_ref.shape[3]
    acc = jnp.zeros((lout, cout), jnp.float32)
    for t, off in enumerate(tap_offsets):
        x = x_ref[0, 0, pl.ds(off, lout), :]
        acc = acc + jnp.dot(x, w_ref[t], preferred_element_type=jnp.float32)
    acc = acc + b_ref[...]
    if negative_slope is not None:
        acc = jnp.where(acc >= 0, acc, negative_slope * acc)
    o_ref[0, 0] = acc.astype(o_ref.dtype)


def _avgpool_kernel(x_ref, inv_ref, o_ref):
    """AvgPool2d(3, stride=2, padding=1, count_include_pad=False), NCHW.

    x_ref:   (1, 4, Hh, Wh)  parity planes of one (n, c) image
    inv_ref: (Ho, Wo)        reciprocal of the valid-tap count (fp32)
    o_ref:   (1, 1, Ho, Wo)
    """
    ho = o_ref.shape[2]
    wo = o_ref.shape[3]
    acc = jnp.zeros((ho, wo), jnp.float32)
    for kh in range(3):
        for kw in range(3):
            pq = (kh % 2) * 2 + (kw % 2)
            acc = acc + x_ref[
                0, pq, pl.ds(kh // 2, ho), pl.ds(kw // 2, wo)
            ].astype(jnp.float32)
    o_ref[0, 0] = (acc * inv_ref[...]).astype(o_ref.dtype)


# ------------------------------ JAX wrappers --------------------------------


def conv2d_lrelu(x, w, b, *, stride, pad, negative_slope, out_dtype):
    """Conv2d(kernel=4, stride, pad) + optional LeakyReLU.  x: NHWC, w: HWIO."""
    n, h, wd, cin = x.shape
    ksz = w.shape[0]                      # 4
    cout = w.shape[3]
    s = stride
    ho = (h + 2 * pad - ksz) // s + 1
    wo = (wd + 2 * pad - ksz) // s + 1
    halo_h = (ksz - 1) // s               # 3 (s=1) or 1 (s=2)
    halo_w = (ksz - 1) // s
    wh = wo + halo_w                      # parity-plane width incl. halo cols

    # contraction-dim padding + lane-dense output for the 1-channel final conv
    cin_p = -(-cin // 8) * 8
    cp = 128 if cout < 8 else cout

    # row-tile size: keep the fp32 accumulator around ~0.5-1 MiB of VMEM
    target_m = max(256, min(2048, (512 * 1024) // (4 * cp)))
    th = max(1, min(ho, max(1, target_m // wh)))
    r = -(-ho // th)                      # number of row tiles
    lh = th + halo_h                      # plane rows per tile (with halo)
    hh = r * th + halo_h                  # total plane rows (incl. tail pad)
    lin_plane = lh * wh + halo_w          # flattened per-plane slab length
    lout = th * wh

    # ---- wrapper-side layout (XLA glue, ~1x input traffic) -----------------
    xb = x.astype(jnp.bfloat16)
    if cin_p != cin:
        xb = jnp.pad(xb, ((0, 0), (0, 0), (0, 0), (0, cin_p - cin)))
    xp = jnp.pad(
        xb, ((0, 0), (pad, s * hh - h - pad), (pad, s * wh - wd - pad), (0, 0)))
    # parity planes: planes[n, p*s+q, i, j, c] = xp[n, s*i + p, s*j + q, c]
    planes = xp.reshape(n, hh, s, wh, s, cin_p).transpose(0, 2, 4, 1, 3, 5)
    planes = planes.reshape(n, s * s, hh, wh, cin_p)
    # overlapping row tiles (halo_h rows duplicated per tile)
    row_idx = jnp.arange(r)[:, None] * th + jnp.arange(lh)[None, :]
    xt = planes[:, :, row_idx, :, :]                    # (n, s*s, r, lh, wh, cin)
    xt = xt.transpose(0, 2, 1, 3, 4, 5).reshape(n, r, s * s, lh * wh, cin_p)
    xt = jnp.pad(xt, ((0, 0), (0, 0), (0, 0), (0, halo_w), (0, 0)))
    xt = xt.reshape(n, r, s * s * lin_plane, cin_p)

    wt = w.reshape(ksz * ksz, cin, cout)
    wt = jnp.pad(wt, ((0, 0), (0, cin_p - cin), (0, cp - cout)))
    wt = wt.astype(jnp.bfloat16)
    bb = jnp.pad(b.astype(jnp.float32), ((0, cp - cout),)).reshape(1, cp)

    tap_offsets = tuple(
        ((kh % s) * s + (kw % s)) * lin_plane + (kh // s) * wh + (kw // s)
        for kh in range(ksz) for kw in range(ksz))

    out = pl.pallas_call(
        functools.partial(_conv_tap_kernel, tap_offsets=tap_offsets,
                          negative_slope=negative_slope),
        out_shape=jax.ShapeDtypeStruct((n, r, lout, cp), out_dtype),
        grid=(n, r),
        in_specs=[
            pl.BlockSpec((1, 1, s * s * lin_plane, cin_p),
                         lambda i, j: (i, j, 0, 0)),
            pl.BlockSpec((ksz * ksz, cin_p, cp), lambda i, j: (0, 0, 0)),
            pl.BlockSpec((1, cp), lambda i, j: (0, 0)),
        ],
        out_specs=pl.BlockSpec((1, 1, lout, cp), lambda i, j: (i, j, 0, 0)),
        compiler_params=pltpu.CompilerParams(
            dimension_semantics=("parallel", "parallel"),
            vmem_limit_bytes=_VMEM_LIMIT),
    )(xt, wt, bb)

    out = out.reshape(n, r * th, wh, cp)[:, :ho, :wo, :cout]
    return out


def avg_pool_3x3_s2(x):
    """nn.AvgPool2d(3, stride=2, padding=1, count_include_pad=False), NCHW."""
    n, c, h, wd = x.shape
    ho = (h - 1) // 2 + 1
    wo = (wd - 1) // 2 + 1
    hh, wh = ho + 1, wo + 1

    xp = jnp.pad(x, ((0, 0), (0, 0), (1, 2 * hh - h - 1), (1, 2 * wh - wd - 1)))
    planes = xp.reshape(n, c, hh, 2, wh, 2).transpose(0, 1, 3, 5, 2, 4)
    planes = planes.reshape(n, c * 4, hh, wh)   # channel-major, 4 parity planes

    def valid(size, out_size):
        idx = jnp.arange(out_size)[:, None] * 2 + jnp.arange(3)[None, :] - 1
        return jnp.sum(((idx >= 0) & (idx < size)).astype(jnp.float32), axis=1)

    inv = 1.0 / (valid(h, ho)[:, None] * valid(wd, wo)[None, :])

    out = pl.pallas_call(
        _avgpool_kernel,
        out_shape=jax.ShapeDtypeStruct((n, c, ho, wo), x.dtype),
        grid=(n, c),
        in_specs=[
            pl.BlockSpec((1, 4, hh, wh), lambda i, j: (i, j, 0, 0)),
            pl.BlockSpec((ho, wo), lambda i, j: (0, 0)),
        ],
        out_specs=pl.BlockSpec((1, 1, ho, wo), lambda i, j: (i, j, 0, 0)),
        compiler_params=pltpu.CompilerParams(
            dimension_semantics=("parallel", "parallel"),
            vmem_limit_bytes=_VMEM_LIMIT),
    )(planes, inv)
    return out


# --------------------------- parameter construction -------------------------


def init_discriminator_params(key, in_channels, base_channels=64, n_layers=3):
    """Deterministic synthetic weights for one PatchGAN discriminator."""
    cfg = []  # (cin, cout, stride, has_act)
    nf = base_channels
    cfg.append((in_channels, nf, 2, True))
    for _ in range(1, n_layers):
        nf_prev, nf = nf, min(nf * 2, 512)
        cfg.append((nf_prev, nf, 2, True))
    nf_prev, nf = nf, min(nf * 2, 512)
    cfg.append((nf_prev, nf, 1, True))
    cfg.append((nf, 1, 1, False))  # final prediction conv, no activation

    params = []
    for (ci, co, stride, has_act) in cfg:
        key, wkey = jax.random.split(key)
        w = 0.02 * jax.random.normal(wkey, (4, 4, ci, co), jnp.float32)
        b = jnp.zeros((co,), jnp.float32)
        params.append((w, b, stride, 2, 0.2 if has_act else None))
    return params


# ------------------------------- forward pass --------------------------------


def discriminator_forward(x_nchw, params):
    h = jnp.transpose(x_nchw, (0, 2, 3, 1))           # NCHW -> NHWC
    last = len(params) - 1
    for idx, (w, b, stride, pad, slope) in enumerate(params):
        out_dtype = jnp.float32 if idx == last else jnp.bfloat16
        h = conv2d_lrelu(h, w, b, stride=stride, pad=pad,
                         negative_slope=slope, out_dtype=out_dtype)
    return jnp.transpose(h, (0, 3, 1, 2))             # NHWC -> NCHW


def multiscale_discriminator_forward(x_nchw, disc_params):
    """Matches MultiscaleDiscriminator.forward: list of per-scale outputs (NCHW)."""
    outputs = []
    x = x_nchw
    for i, params in enumerate(disc_params):
        if i != 0:
            x = avg_pool_3x3_s2(x)
        outputs.append(discriminator_forward(x, params))
    return outputs


# ----------------------------------- main ------------------------------------

if __name__ == "__main__":
    in_channels = 4
    base_channels = 16
    n_layers = 3
    n_discriminators = 3
    batch, spatial = 2, 16

    root = jax.random.PRNGKey(0)
    kx, kp = jax.random.split(root)
    x = jax.random.normal(kx, (batch, in_channels, spatial, spatial), jnp.float32)

    disc_params = []
    for _ in range(n_discriminators):
        kp, kd = jax.random.split(kp)
        disc_params.append(
            init_discriminator_params(kd, in_channels, base_channels, n_layers))

    outputs = multiscale_discriminator_forward(x, disc_params)
    for o in outputs:
        jax.block_until_ready(o)

    print("KERNEL_OK")
</pallas_src>

<mosaic_0001>
module attributes {stable_mosaic.version = 11 : i64} {
  func.func @_conv_tap_kernel(%arg0: i32, %arg1: i32, %arg2: memref<1x1x404x8xbf16, #tpu.memory_space<vmem>>, %arg3: memref<16x8x16xbf16, #tpu.memory_space<vmem>>, %arg4: memref<1x16xf32, #tpu.memory_space<vmem>>, %arg5: memref<1x1x90x16xbf16, #tpu.memory_space<vmem>>) attributes {dimension_semantics = [#tpu.dimension_semantics<parallel>, #tpu.dimension_semantics<parallel>], iteration_bounds = array<i64: 2, 1>, scalar_prefetch = 0 : i64, scratch_operands = 0 : i64, tpu.core_type = #tpu.core_type<tc>, window_params = [{transform_indices = @transform_0, window_bounds = array<i64: 1, 1, 404, 8>}, {pipeline_mode = #tpu.pipeline_mode<synchronous>, transform_indices = @transform_1, window_bounds = array<i64: 16, 8, 16>}, {pipeline_mode = #tpu.pipeline_mode<synchronous>, transform_indices = @transform_2, window_bounds = array<i64: 1, 16>}, {transform_indices = @transform_3, window_bounds = array<i64: 1, 1, 90, 16>}]} {
    %cst = arith.constant 0.000000e+00 : f32
    %0 = vector.broadcast %cst : f32 to vector<90x16xf32>
    %c0 = arith.constant 0 : index
    %c0_0 = arith.constant 0 : index
    %c0_1 = arith.constant 0 : index
    %c0_2 = arith.constant 0 : index
    %1 = vector.load %arg2[%c0, %c0_0, %c0_1, %c0_2] : memref<1x1x404x8xbf16, #tpu.memory_space<vmem>>, vector<1x1x90x8xbf16>
    %2 = vector.shape_cast %1 : vector<1x1x90x8xbf16> to vector<90x8xbf16>
    %c0_3 = arith.constant 0 : index
    %c0_4 = arith.constant 0 : index
    %c0_5 = arith.constant 0 : index
    %3 = vector.load %arg3[%c0_3, %c0_4, %c0_5] : memref<16x8x16xbf16, #tpu.memory_space<vmem>>, vector<1x8x16xbf16>
    %4 = vector.shape_cast %3 : vector<1x8x16xbf16> to vector<8x16xbf16>
    %cst_6 = arith.constant dense<0.000000e+00> : vector<90x16xf32>
    %5 = tpu.matmul %2, %4, %cst_6 {dimension_numbers = #tpu.dot_dimension_numbers<[1], [0], [0], [1], [0, 0, 1, 1], [], []>} : vector<90x8xbf16>, vector<8x16xbf16>, vector<90x16xf32> -> vector<90x16xf32>
    %6 = arith.addf %0, %5 : vector<90x16xf32>
    %c0_7 = arith.constant 0 : index
    %c0_8 = arith.constant 0 : index
    %c101 = arith.constant 101 : index
    %c0_9 = arith.constant 0 : index
    %7 = vector.load %arg2[%c0_7, %c0_8, %c101, %c0_9] : memref<1x1x404x8xbf16, #tpu.memory_space<vmem>>, vector<1x1x90x8xbf16>
    %8 = vector.shape_cast %7 : vector<1x1x90x8xbf16> to vector<90x8xbf16>
    %c1 = arith.constant 1 : index
    %c0_10 = arith.constant 0 : index
    %c0_11 = arith.constant 0 : index
    %9 = vector.load %arg3[%c1, %c0_10, %c0_11] : memref<16x8x16xbf16, #tpu.memory_space<vmem>>, vector<1x8x16xbf16>
    %10 = vector.shape_cast %9 : vector<1x8x16xbf16> to vector<8x16xbf16>
    %cst_12 = arith.constant dense<0.000000e+00> : vector<90x16xf32>
    %11 = tpu.matmul %8, %10, %cst_12 {dimension_numbers = #tpu.dot_dimension_numbers<[1], [0], [0], [1], [0, 0, 1, 1], [], []>} : vector<90x8xbf16>, vector<8x16xbf16>, vector<90x16xf32> -> vector<90x16xf32>
    %12 = arith.addf %6, %11 : vector<90x16xf32>
    %c0_13 = arith.constant 0 : index
    %c0_14 = arith.constant 0 : index
    %c1_15 = arith.constant 1 : index
    %c0_16 = arith.constant 0 : index
    %13 = vector.load %arg2[%c0_13, %c0_14, %c1_15, %c0_16] : memref<1x1x404x8xbf16, #tpu.memory_space<vmem>>, vector<1x1x90x8xbf16>
    %14 = vector.shape_cast %13 : vector<1x1x90x8xbf16> to vector<90x8xbf16>
    %c2 = arith.constant 2 : index
    %c0_17 = arith.constant 0 : index
    %c0_18 = arith.constant 0 : index
    %15 = vector.load %arg3[%c2, %c0_17, %c0_18] : memref<16x8x16xbf16, #tpu.memory_space<vmem>>, vector<1x8x16xbf16>
    %16 = vector.shape_cast %15 : vector<1x8x16xbf16> to vector<8x16xbf16>
    %cst_19 = arith.constant dense<0.000000e+00> : vector<90x16xf32>
    %17 = tpu.matmul %14, %16, %cst_19 {dimension_numbers = #tpu.dot_dimension_numbers<[1], [0], [0], [1], [0, 0, 1, 1], [], []>} : vector<90x8xbf16>, vector<8x16xbf16>, vector<90x16xf32> -> vector<90x16xf32>
    %18 = arith.addf %12, %17 : vector<90x16xf32>
    %c0_20 = arith.constant 0 : index
    %c0_21 = arith.constant 0 : index
    %c102 = arith.constant 102 : index
    %c0_22 = arith.constant 0 : index
    %19 = vector.load %arg2[%c0_20, %c0_21, %c102, %c0_22] : memref<1x1x404x8xbf16, #tpu.memory_space<vmem>>, vector<1x1x90x8xbf16>
    %20 = vector.shape_cast %19 : vector<1x1x90x8xbf16> to vector<90x8xbf16>
    %c3 = arith.constant 3 : index
    %c0_23 = arith.constant 0 : index
    %c0_24 = arith.constant 0 : index
    %21 = vector.load %arg3[%c3, %c0_23, %c0_24] : memref<16x8x16xbf16, #tpu.memory_space<vmem>>, vector<1x8x16xbf16>
    %22 = vector.shape_cast %21 : vector<1x8x16xbf16> to vector<8x16xbf16>
    %cst_25 = arith.constant dense<0.000000e+00> : vector<90x16xf32>
    %23 = tpu.matmul %20, %22, %cst_25 {dimension_numbers = #tpu.dot_dimension_numbers<[1], [0], [0], [1], [0, 0, 1, 1], [], []>} : vector<90x8xbf16>, vector<8x16xbf16>, vector<90x16xf32> -> vector<90x16xf32>
    %24 = arith.addf %18, %23 : vector<90x16xf32>
    %c0_26 = arith.constant 0 : index
    %c0_27 = arith.constant 0 : index
    %c202 = arith.constant 202 : index
    %c0_28 = arith.constant 0 : index
    %25 = vector.load %arg2[%c0_26, %c0_27, %c202, %c0_28] : memref<1x1x404x8xbf16, #tpu.memory_space<vmem>>, vector<1x1x90x8xbf16>
    %26 = vector.shape_cast %25 : vector<1x1x90x8xbf16> to vector<90x8xbf16>
    %c4 = arith.constant 4 : index
    %c0_29 = arith.constant 0 : index
    %c0_30 = arith.constant 0 : index
    %27 = vector.load %arg3[%c4, %c0_29, %c0_30] : memref<16x8x16xbf16, #tpu.memory_space<vmem>>, vector<1x8x16xbf16>
    %28 = vector.shape_cast %27 : vector<1x8x16xbf16> to vector<8x16xbf16>
    %cst_31 = arith.constant dense<0.000000e+00> : vector<90x16xf32>
    %29 = tpu.matmul %26, %28, %cst_31 {dimension_numbers = #tpu.dot_dimension_numbers<[1], [0], [0], [1], [0, 0, 1, 1], [], []>} : vector<90x8xbf16>, vector<8x16xbf16>, vector<90x16xf32> -> vector<90x16xf32>
    %30 = arith.addf %24, %29 : vector<90x16xf32>
    %c0_32 = arith.constant 0 : index
    %c0_33 = arith.constant 0 : index
    %c303 = arith.constant 303 : index
    %c0_34 = arith.constant 0 : index
    %31 = vector.load %arg2[%c0_32, %c0_33, %c303, %c0_34] : memref<1x1x404x8xbf16, #tpu.memory_space<vmem>>, vector<1x1x90x8xbf16>
    %32 = vector.shape_cast %31 : vector<1x1x90x8xbf16> to vector<90x8xbf16>
    %c5 = arith.constant 5 : index
    %c0_35 = arith.constant 0 : index
    %c0_36 = arith.constant 0 : index
    %33 = vector.load %arg3[%c5, %c0_35, %c0_36] : memref<16x8x16xbf16, #tpu.memory_space<vmem>>, vector<1x8x16xbf16>
    %34 = vector.shape_cast %33 : vector<1x8x16xbf16> to vector<8x16xbf16>
    %cst_37 = arith.constant dense<0.000000e+00> : vector<90x16xf32>
    %35 = tpu.matmul %32, %34, %cst_37 {dimension_numbers = #tpu.dot_dimension_numbers<[1], [0], [0], [1], [0, 0, 1, 1], [], []>} : vector<90x8xbf16>, vector<8x16xbf16>, vector<90x16xf32> -> vector<90x16xf32>
    %36 = arith.addf %30, %35 : vector<90x16xf32>
    %c0_38 = arith.constant 0 : index
    %c0_39 = arith.constant 0 : index
    %c203 = arith.constant 203 : index
    %c0_40 = arith.constant 0 : index
    %37 = vector.load %arg2[%c0_38, %c0_39, %c203, %c0_40] : memref<1x1x404x8xbf16, #tpu.memory_space<vmem>>, vector<1x1x90x8xbf16>
    %38 = vector.shape_cast %37 : vector<1x1x90x8xbf16> to vector<90x8xbf16>
    %c6 = arith.constant 6 : index
    %c0_41 = arith.constant 0 : index
    %c0_42 = arith.constant 0 : index
    %39 = vector.load %arg3[%c6, %c0_41, %c0_42] : memref<16x8x16xbf16, #tpu.memory_space<vmem>>, vector<1x8x16xbf16>
    %40 = vector.shape_cast %39 : vector<1x8x16xbf16> to vector<8x16xbf16>
    %cst_43 = arith.constant dense<0.000000e+00> : vector<90x16xf32>
    %41 = tpu.matmul %38, %40, %cst_43 {dimension_numbers = #tpu.dot_dimension_numbers<[1], [0], [0], [1], [0, 0, 1, 1], [], []>} : vector<90x8xbf16>, vector<8x16xbf16>, vector<90x16xf32> -> vector<90x16xf32>
    %42 = arith.addf %36, %41 : vector<90x16xf32>
    %c0_44 = arith.constant 0 : index
    %c0_45 = arith.constant 0 : index
    %c304 = arith.constant 304 : index
    %c0_46 = arith.constant 0 : index
    %43 = vector.load %arg2[%c0_44, %c0_45, %c304, %c0_46] : memref<1x1x404x8xbf16, #tpu.memory_space<vmem>>, vector<1x1x90x8xbf16>
    %44 = vector.shape_cast %43 : vector<1x1x90x8xbf16> to vector<90x8xbf16>
    %c7 = arith.constant 7 : index
    %c0_47 = arith.constant 0 : index
    %c0_48 = arith.constant 0 : index
    %45 = vector.load %arg3[%c7, %c0_47, %c0_48] : memref<16x8x16xbf16, #tpu.memory_space<vmem>>, vector<1x8x16xbf16>
    %46 = vector.shape_cast %45 : vector<1x8x16xbf16> to vector<8x16xbf16>
    %cst_49 = arith.constant dense<0.000000e+00> : vector<90x16xf32>
    %47 = tpu.matmul %44, %46, %cst_49 {dimension_numbers = #tpu.dot_dimension_numbers<[1], [0], [0], [1], [0, 0, 1, 1], [], []>} : vector<90x8xbf16>, vector<8x16xbf16>, vector<90x16xf32> -> vector<90x16xf32>
    %48 = arith.addf %42, %47 : vector<90x16xf32>
    %c0_50 = arith.constant 0 : index
    %c0_51 = arith.constant 0 : index
    %c10 = arith.constant 10 : index
    %c0_52 = arith.constant 0 : index
    %49 = vector.load %arg2[%c0_50, %c0_51, %c10, %c0_52] : memref<1x1x404x8xbf16, #tpu.memory_space<vmem>>, vector<1x1x90x8xbf16>
    %50 = vector.shape_cast %49 : vector<1x1x90x8xbf16> to vector<90x8xbf16>
    %c8 = arith.constant 8 : index
    %c0_53 = arith.constant 0 : index
    %c0_54 = arith.constant 0 : index
    %51 = vector.load %arg3[%c8, %c0_53, %c0_54] : memref<16x8x16xbf16, #tpu.memory_space<vmem>>, vector<1x8x16xbf16>
    %52 = vector.shape_cast %51 : vector<1x8x16xbf16> to vector<8x16xbf16>
    %cst_55 = arith.constant dense<0.000000e+00> : vector<90x16xf32>
    %53 = tpu.matmul %50, %52, %cst_55 {dimension_numbers = #tpu.dot_dimension_numbers<[1], [0], [0], [1], [0, 0, 1, 1], [], []>} : vector<90x8xbf16>, vector<8x16xbf16>, vector<90x16xf32> -> vector<90x16xf32>
    %54 = arith.addf %48, %53 : vector<90x16xf32>
    %c0_56 = arith.constant 0 : index
    %c0_57 = arith.constant 0 : index
    %c111 = arith.constant 111 : index
    %c0_58 = arith.constant 0 : index
    %55 = vector.load %arg2[%c0_56, %c0_57, %c111, %c0_58] : memref<1x1x404x8xbf16, #tpu.memory_space<vmem>>, vector<1x1x90x8xbf16>
    %56 = vector.shape_cast %55 : vector<1x1x90x8xbf16> to vector<90x8xbf16>
    %c9 = arith.constant 9 : index
    %c0_59 = arith.constant 0 : index
    %c0_60 = arith.constant 0 : index
    %57 = vector.load %arg3[%c9, %c0_59, %c0_60] : memref<16x8x16xbf16, #tpu.memory_space<vmem>>, vector<1x8x16xbf16>
    %58 = vector.shape_cast %57 : vector<1x8x16xbf16> to vector<8x16xbf16>
    %cst_61 = arith.constant dense<0.000000e+00> : vector<90x16xf32>
    %59 = tpu.matmul %56, %58, %cst_61 {dimension_numbers = #tpu.dot_dimension_numbers<[1], [0], [0], [1], [0, 0, 1, 1], [], []>} : vector<90x8xbf16>, vector<8x16xbf16>, vector<90x16xf32> -> vector<90x16xf32>
    %60 = arith.addf %54, %59 : vector<90x16xf32>
    %c0_62 = arith.constant 0 : index
    %c0_63 = arith.constant 0 : index
    %c11 = arith.constant 11 : index
    %c0_64 = arith.constant 0 : index
    %61 = vector.load %arg2[%c0_62, %c0_63, %c11, %c0_64] : memref<1x1x404x8xbf16, #tpu.memory_space<vmem>>, vector<1x1x90x8xbf16>
    %62 = vector.shape_cast %61 : vector<1x1x90x8xbf16> to vector<90x8xbf16>
    %c10_65 = arith.constant 10 : index
    %c0_66 = arith.constant 0 : index
    %c0_67 = arith.constant 0 : index
    %63 = vector.load %arg3[%c10_65, %c0_66, %c0_67] : memref<16x8x16xbf16, #tpu.memory_space<vmem>>, vector<1x8x16xbf16>
    %64 = vector.shape_cast %63 : vector<1x8x16xbf16> to vector<8x16xbf16>
    %cst_68 = arith.constant dense<0.000000e+00> : vector<90x16xf32>
    %65 = tpu.matmul %62, %64, %cst_68 {dimension_numbers = #tpu.dot_dimension_numbers<[1], [0], [0], [1], [0, 0, 1, 1], [], []>} : vector<90x8xbf16>, vector<8x16xbf16>, vector<90x16xf32> -> vector<90x16xf32>
    %66 = arith.addf %60, %65 : vector<90x16xf32>
    %c0_69 = arith.constant 0 : index
    %c0_70 = arith.constant 0 : index
    %c112 = arith.constant 112 : index
    %c0_71 = arith.constant 0 : index
    %67 = vector.load %arg2[%c0_69, %c0_70, %c112, %c0_71] : memref<1x1x404x8xbf16, #tpu.memory_space<vmem>>, vector<1x1x90x8xbf16>
    %68 = vector.shape_cast %67 : vector<1x1x90x8xbf16> to vector<90x8xbf16>
    %c11_72 = arith.constant 11 : index
    %c0_73 = arith.constant 0 : index
    %c0_74 = arith.constant 0 : index
    %69 = vector.load %arg3[%c11_72, %c0_73, %c0_74] : memref<16x8x16xbf16, #tpu.memory_space<vmem>>, vector<1x8x16xbf16>
    %70 = vector.shape_cast %69 : vector<1x8x16xbf16> to vector<8x16xbf16>
    %cst_75 = arith.constant dense<0.000000e+00> : vector<90x16xf32>
    %71 = tpu.matmul %68, %70, %cst_75 {dimension_numbers = #tpu.dot_dimension_numbers<[1], [0], [0], [1], [0, 0, 1, 1], [], []>} : vector<90x8xbf16>, vector<8x16xbf16>, vector<90x16xf32> -> vector<90x16xf32>
    %72 = arith.addf %66, %71 : vector<90x16xf32>
    %c0_76 = arith.constant 0 : index
    %c0_77 = arith.constant 0 : index
    %c212 = arith.constant 212 : index
    %c0_78 = arith.constant 0 : index
    %73 = vector.load %arg2[%c0_76, %c0_77, %c212, %c0_78] : memref<1x1x404x8xbf16, #tpu.memory_space<vmem>>, vector<1x1x90x8xbf16>
    %74 = vector.shape_cast %73 : vector<1x1x90x8xbf16> to vector<90x8xbf16>
    %c12 = arith.constant 12 : index
    %c0_79 = arith.constant 0 : index
    %c0_80 = arith.constant 0 : index
    %75 = vector.load %arg3[%c12, %c0_79, %c0_80] : memref<16x8x16xbf16, #tpu.memory_space<vmem>>, vector<1x8x16xbf16>
    %76 = vector.shape_cast %75 : vector<1x8x16xbf16> to vector<8x16xbf16>
    %cst_81 = arith.constant dense<0.000000e+00> : vector<90x16xf32>
    %77 = tpu.matmul %74, %76, %cst_81 {dimension_numbers = #tpu.dot_dimension_numbers<[1], [0], [0], [1], [0, 0, 1, 1], [], []>} : vector<90x8xbf16>, vector<8x16xbf16>, vector<90x16xf32> -> vector<90x16xf32>
    %78 = arith.addf %72, %77 : vector<90x16xf32>
    %c0_82 = arith.constant 0 : index
    %c0_83 = arith.constant 0 : index
    %c313 = arith.constant 313 : index
    %c0_84 = arith.constant 0 : index
    %79 = vector.load %arg2[%c0_82, %c0_83, %c313, %c0_84] : memref<1x1x404x8xbf16, #tpu.memory_space<vmem>>, vector<1x1x90x8xbf16>
    %80 = vector.shape_cast %79 : vector<1x1x90x8xbf16> to vector<90x8xbf16>
    %c13 = arith.constant 13 : index
    %c0_85 = arith.constant 0 : index
    %c0_86 = arith.constant 0 : index
    %81 = vector.load %arg3[%c13, %c0_85, %c0_86] : memref<16x8x16xbf16, #tpu.memory_space<vmem>>, vector<1x8x16xbf16>
    %82 = vector.shape_cast %81 : vector<1x8x16xbf16> to vector<8x16xbf16>
    %cst_87 = arith.constant dense<0.000000e+00> : vector<90x16xf32>
    %83 = tpu.matmul %80, %82, %cst_87 {dimension_numbers = #tpu.dot_dimension_numbers<[1], [0], [0], [1], [0, 0, 1, 1], [], []>} : vector<90x8xbf16>, vector<8x16xbf16>, vector<90x16xf32> -> vector<90x16xf32>
    %84 = arith.addf %78, %83 : vector<90x16xf32>
    %c0_88 = arith.constant 0 : index
    %c0_89 = arith.constant 0 : index
    %c213 = arith.constant 213 : index
    %c0_90 = arith.constant 0 : index
    %85 = vector.load %arg2[%c0_88, %c0_89, %c213, %c0_90] : memref<1x1x404x8xbf16, #tpu.memory_space<vmem>>, vector<1x1x90x8xbf16>
    %86 = vector.shape_cast %85 : vector<1x1x90x8xbf16> to vector<90x8xbf16>
    %c14 = arith.constant 14 : index
    %c0_91 = arith.constant 0 : index
    %c0_92 = arith.constant 0 : index
    %87 = vector.load %arg3[%c14, %c0_91, %c0_92] : memref<16x8x16xbf16, #tpu.memory_space<vmem>>, vector<1x8x16xbf16>
    %88 = vector.shape_cast %87 : vector<1x8x16xbf16> to vector<8x16xbf16>
    %cst_93 = arith.constant dense<0.000000e+00> : vector<90x16xf32>
    %89 = tpu.matmul %86, %88, %cst_93 {dimension_numbers = #tpu.dot_dimension_numbers<[1], [0], [0], [1], [0, 0, 1, 1], [], []>} : vector<90x8xbf16>, vector<8x16xbf16>, vector<90x16xf32> -> vector<90x16xf32>
    %90 = arith.addf %84, %89 : vector<90x16xf32>
    %c0_94 = arith.constant 0 : index
    %c0_95 = arith.constant 0 : index
    %c314 = arith.constant 314 : index
    %c0_96 = arith.constant 0 : index
    %91 = vector.load %arg2[%c0_94, %c0_95, %c314, %c0_96] : memref<1x1x404x8xbf16, #tpu.memory_space<vmem>>, vector<1x1x90x8xbf16>
    %92 = vector.shape_cast %91 : vector<1x1x90x8xbf16> to vector<90x8xbf16>
    %c15 = arith.constant 15 : index
    %c0_97 = arith.constant 0 : index
    %c0_98 = arith.constant 0 : index
    %93 = vector.load %arg3[%c15, %c0_97, %c0_98] : memref<16x8x16xbf16, #tpu.memory_space<vmem>>, vector<1x8x16xbf16>
    %94 = vector.shape_cast %93 : vector<1x8x16xbf16> to vector<8x16xbf16>
    %cst_99 = arith.constant dense<0.000000e+00> : vector<90x16xf32>
    %95 = tpu.matmul %92, %94, %cst_99 {dimension_numbers = #tpu.dot_dimension_numbers<[1], [0], [0], [1], [0, 0, 1, 1], [], []>} : vector<90x8xbf16>, vector<8x16xbf16>, vector<90x16xf32> -> vector<90x16xf32>
    %96 = arith.addf %90, %95 : vector<90x16xf32>
    %c0_100 = arith.constant 0 : index
    %c0_101 = arith.constant 0 : index
    %97 = vector.load %arg4[%c0_100, %c0_101] : memref<1x16xf32, #tpu.memory_space<vmem>>, vector<1x16xf32>
    %98 = vector.broadcast %97 : vector<1x16xf32> to vector<90x16xf32>
    %99 = arith.addf %96, %98 : vector<90x16xf32>
    %cst_102 = arith.constant 0.000000e+00 : f32
    %100 = vector.broadcast %cst_102 : f32 to vector<90x16xf32>
    %101 = arith.cmpf oge, %99, %100 : vector<90x16xf32>
    %cst_103 = arith.constant 2.000000e-01 : f32
    %102 = vector.broadcast %cst_103 : f32 to vector<90x16xf32>
    %103 = arith.mulf %102, %99 : vector<90x16xf32>
    %104 = arith.select %101, %99, %103 : vector<90x16xi1>, vector<90x16xf32>
    %105 = arith.truncf %104 : vector<90x16xf32> to vector<90x16xbf16>
    %c0_104 = arith.constant 0 : index
    %c0_105 = arith.constant 0 : index
    %c0_106 = arith.constant 0 : index
    %c0_107 = arith.constant 0 : index
    %106 = vector.load %arg5[%c0_104, %c0_105, %c0_106, %c0_107] : memref<1x1x90x16xbf16, #tpu.memory_space<vmem>>, vector<1x1x90x16xbf16>
    %107 = vector.shape_cast %106 : vector<1x1x90x16xbf16> to vector<90x16xbf16>
    %108 = vector.shape_cast %105 : vector<90x16xbf16> to vector<1x1x90x16xbf16>
    tpu.vector_store %arg5[%c0_104, %c0_105, %c0_106, %c0_107], %108 {strides = array<i32>} : memref<1x1x90x16xbf16, #tpu.memory_space<vmem>>, vector<1x1x90x16xbf16>,
    return
  }
  func.func @transform_0(%arg0: i32, %arg1: i32) -> (i32, i32, i32, i32) {
    %c0_i32 = arith.constant 0 : i32
    %c0_i32_0 = arith.constant 0 : i32
    %c0_i32_1 = arith.constant 0 : i32
    return %arg0, %arg1, %c0_i32, %c0_i32_0 : i32, i32, i32, i32
  }
  func.func @transform_1(%arg0: i32, %arg1: i32) -> (i32, i32, i32) {
    %c0_i32 = arith.constant 0 : i32
    %c0_i32_0 = arith.constant 0 : i32
    %c0_i32_1 = arith.constant 0 : i32
    %c0_i32_2 = arith.constant 0 : i32
    return %c0_i32, %c0_i32_0, %c0_i32_1 : i32, i32, i32
  }
  func.func @transform_2(%arg0: i32, %arg1: i32) -> (i32, i32) {
    %c0_i32 = arith.constant 0 : i32
    %c0_i32_0 = arith.constant 0 : i32
    %c0_i32_1 = arith.constant 0 : i32
    return %c0_i32, %c0_i32_0 : i32, i32
  }
  func.func @transform_3(%arg0: i32, %arg1: i32) -> (i32, i32, i32, i32) {
    %c0_i32 = arith.constant 0 : i32
    %c0_i32_0 = arith.constant 0 : i32
    %c0_i32_1 = arith.constant 0 : i32
    return %arg0, %arg1, %c0_i32, %c0_i32_0 : i32, i32, i32, i32
  }
}

</mosaic_0001>

<llo_original>
// kernel: tpu_custom_call.1
$region0: #{tpu_custom_call.1}
  #allocation0 [shape = 'u32[]', space=smem, size = 0x4, offset = 0x4, fixed_abs, tag = 'smem constant byte address 0x4 - core index']
  #allocation1 [shape = 'u32[72,128]{1,0:T(1,128)}', space=vmem, size = 0x9000, scoped, tag = 'internal scratch']
  %s0 = inlined_call_operand.vmem [shape: bf16[2,1,404,8], index: 0, kind: input, shape index: {}]
  %s1 = inlined_call_operand.vmem [shape: bf16[16,8,16], index: 1, kind: input, shape index: {}]
  %s2 = inlined_call_operand.vmem [shape: f32[1,16], index: 2, kind: input, shape index: {}]
  %s3 = inlined_call_operand.vmem [shape: bf16[2,1,90,16], index: 3, kind: output, shape index: {}]
  %s4 = sld [smem:[#allocation0]]
  $region45: #{tpu_custom_call.1} parent=0
    _
  %s6 = ssub.s32 1, %s4
  %s7 = scalar_select 0, %s6, %s4
  loop: start=0, step=1, limit=4
  $region2: #{tpu_custom_call.1} parent=0 // loop_pre_header
    _
  $region3: #{tpu_custom_call.1} parent=0 // loop_header
    %s9 = sphi 0, %s13
    %p10 = scmp.ge.s32.totalorder %s9, 4
    %s16 = sphi 0, %s28
    %s17 = sphi 0, %s24
    %s18 = sphi 0, %s16
    %s19 = sphi 0, %s17
    %s20 = sphi 0, %s18
    %s21 = sphi 0, %s19
    %s33 = sphi 0, %s35
    %s36 = sphi 0, %s33
    %s37 = sphi 0, %s36
    %s53 = sphi 0, %s37
    %s57 = sphi 0, %s57
    %s59 = sphi 0, %s57
    %s60 = sphi 0, %s59
    %s74 = sphi 0, %s60
    %s78 = sphi 0, %s78
    %s80 = sphi 0, %s78
    %s81 = sphi 0, %s80
    %s95 = sphi 0, %s81
    %s103 = sphi 0, %s105
    %s106 = sphi 0, %s103
    %s107 = sphi 0, %s106
    %s123 = sphi 0, %s107
  $region4: #{tpu_custom_call.1} parent=0 // loop_header_branch
    %12 = sbr.rel (%p10) target = $region8
  $region5: #{tpu_custom_call.1} parent=0 // loop_body
    %s14 = ssub.s32 %s9, 1
    %s15 = ssub.s32 %s9, 2
    %s22 = sadd.s32 1, %s17
    %p23 = scmp.ge.s32.totalorder %s22, 1
    %s24 = scalar_select %p23, 0, %s22
    %s25 = sadd.s32 1, %s16
    %s26 = scalar_select %p23, %s25, %s16
    %p27 = scmp.ge.s32.totalorder %s26, 2
    %s28 = scalar_select %p27, 0, %s26
    %s29 = ssub.s32 %s16, %s28
    %s30 = ssub.s32 %s17, %s24
    %s31 = sor.u32 %s29, %s30
    %p32 = scmp.eq.s32.totalorder %s31, 0
    %s34 = sadd.s32 %s33, 1
    %s35 = scalar_select %p32, %s33, %s34
    %p38 = pneg %p32
    %p39 = scmp.eq.s32.totalorder %s9, 1
    %p40 = por %p38, %p39
    %p41 = scmp.ne.s32.totalorder %s33, %s36
    %p42 = scmp.eq.s32.totalorder %s9, 0
    %p43 = por %p41, %p42
    %p44 = scmp.ne.s32.totalorder %s33, %s36
    %p45 = scmp.eq.s32.totalorder %s14, 1
    %p46 = por %p44, %p45
    %p47 = scmp.ne.s32.totalorder %s36, %s37
    %p48 = scmp.eq.s32.totalorder %s14, 0
    %p49 = por %p47, %p48
    %p50 = scmp.ne.s32.totalorder %s36, %s37
    %p51 = scmp.eq.s32.totalorder %s15, 1
    %p52 = por %p50, %p51
    %p54 = scmp.ne.s32.totalorder %s37, %s53
    %p55 = scmp.eq.s32.totalorder %s15, 0
    %p56 = por %p54, %p55
    %s58 = sadd.s32 %s57, 1
    %p61 = scmp.eq.s32.totalorder %s9, 1
    %p62 = scmp.ne.s32.totalorder %s57, %s59
    %p63 = scmp.eq.s32.totalorder %s9, 0
    %p64 = por %p62, %p63
    %p65 = scmp.ne.s32.totalorder %s57, %s59
    %p66 = scmp.eq.s32.totalorder %s14, 1
    %p67 = por %p65, %p66
    %p68 = scmp.ne.s32.totalorder %s59, %s60
    %p69 = scmp.eq.s32.totalorder %s14, 0
    %p70 = por %p68, %p69
    %p71 = scmp.ne.s32.totalorder %s59, %s60
    %p72 = scmp.eq.s32.totalorder %s15, 1
    %p73 = por %p71, %p72
    %p75 = scmp.ne.s32.totalorder %s60, %s74
    %p76 = scmp.eq.s32.totalorder %s15, 0
    %p77 = por %p75, %p76
    %s79 = sadd.s32 %s78, 1
    %p82 = scmp.eq.s32.totalorder %s9, 1
    %p83 = scmp.ne.s32.totalorder %s78, %s80
    %p84 = scmp.eq.s32.totalorder %s9, 0
    %p85 = por %p83, %p84
    %p86 = scmp.ne.s32.totalorder %s78, %s80
    %p87 = scmp.eq.s32.totalorder %s14, 1
    %p88 = por %p86, %p87
    %p89 = scmp.ne.s32.totalorder %s80, %s81
    %p90 = scmp.eq.s32.totalorder %s14, 0
    %p91 = por %p89, %p90
    %p92 = scmp.ne.s32.totalorder %s80, %s81
    %p93 = scmp.eq.s32.totalorder %s15, 1
    %p94 = por %p92, %p93
    %p96 = scmp.ne.s32.totalorder %s81, %s95
    %p97 = scmp.eq.s32.totalorder %s15, 0
    %p98 = por %p96, %p97
    %s99 = ssub.s32 %s16, %s28
    %s100 = ssub.s32 %s17, %s24
    %s101 = sor.u32 %s99, %s100
    %p102 = scmp.eq.s32.totalorder %s101, 0
    %s104 = sadd.s32 %s103, 1
    %s105 = scalar_select %p102, %s103, %s104
    %p108 = pneg %p102
    %p109 = scmp.eq.s32.totalorder %s9, 1
    %p110 = por %p108, %p109
    %p111 = scmp.ne.s32.totalorder %s103, %s106
    %p112 = scmp.eq.s32.totalorder %s9, 0
    %p113 = por %p111, %p112
    %p114 = scmp.ne.s32.totalorder %s103, %s106
    %p115 = scmp.eq.s32.totalorder %s14, 1
    %p116 = por %p114, %p115
    %p117 = scmp.ne.s32.totalorder %s106, %s107
    %p118 = scmp.eq.s32.totalorder %s14, 0
    %p119 = por %p117, %p118
    %p120 = scmp.ne.s32.totalorder %s106, %s107
    %p121 = scmp.eq.s32.totalorder %s15, 1
    %p122 = por %p120, %p121
    %p124 = scmp.ne.s32.totalorder %s107, %s123
    %p125 = scmp.eq.s32.totalorder %s15, 0
    %p126 = por %p124, %p125
    %p127 = scmp.le.s32.totalorder 1, %s9
    %p128 = scmp.lt.s32.totalorder %s9, 3
    %p129 = pnand %p127, %p128
    %p130 = pneg %p129
    // Predicated region
    $region9: #{tpu_custom_call.1} parent=5 // pred_check
      _
    $region10: #{tpu_custom_call.1} parent=5 // pred_check_branch
      %132 = sbr.rel (%p129) target = $region12
    $region11: #{tpu_custom_call.1} parent=5 // pred_region
      %s133 = ssub.s32 %s9, 1
      // Predicated region
      $region13: #{tpu_custom_call.1} parent=11 // pred_check
        %p134 = pneg %p70
      $region14: #{tpu_custom_call.1} parent=11 // pred_check_branch
        %136 = sbr.rel (%p134) target = $region16
      $region15: #{tpu_custom_call.1} parent=11 // pred_region
        _
      $region16: #{tpu_custom_call.1} parent=11 // pred_fallthru
        _
      // Predicated region
      $region17: #{tpu_custom_call.1} parent=11 // pred_check
        %p137 = pneg %p91
      $region18: #{tpu_custom_call.1} parent=11 // pred_check_branch
        %139 = sbr.rel (%p137) target = $region20
      $region19: #{tpu_custom_call.1} parent=11 // pred_region
        _
      $region20: #{tpu_custom_call.1} parent=11 // pred_fallthru
        _
    $region12: #{tpu_custom_call.1} parent=5 // pred_fallthru
      _
    %p140 = scmp.lt.s32.totalorder %s9, 2
    // Predicated region
    $region21: #{tpu_custom_call.1} parent=5 // pred_check
      %p141 = pneg %p140
    $region22: #{tpu_custom_call.1} parent=5 // pred_check_branch
      %143 = sbr.rel (%p141) target = $region24
    $region23: #{tpu_custom_call.1} parent=5 // pred_region
      // Predicated region
      $region25: #{tpu_custom_call.1} parent=23 // pred_check
        %p144 = pneg %p43
      $region26: #{tpu_custom_call.1} parent=23 // pred_check_branch
        %146 = sbr.rel (%p144) target = $region28
      $region27: #{tpu_custom_call.1} parent=23 // pred_region
        %p147 = scmp.lt.s32.totalorder %s16, 1
        %s148 = scalar_select %p147, %s16, 1
        %p149 = scmp.lt.s32.totalorder %s17, 0
        %s150 = scalar_select %p149, %s17, 0
        %s151 = smul.addr %s150, 51
        %s152 = smul.addr %s148, 51
        %s153 = sadd.s32 %s151, %s152
        %s154 = smul.addr %s153, 4
        %s155 = scalar_lea.vmem %s0, %s154
      $region28: #{tpu_custom_call.1} parent=23 // pred_fallthru
        _
    $region24: #{tpu_custom_call.1} parent=5 // pred_fallthru
      _
    %p156 = scmp.le.s32.totalorder 1, %s9
    %p157 = scmp.lt.s32.totalorder %s9, 3
    %p158 = pnand %p156, %p157
    %p159 = pneg %p158
    // Predicated region
    $region29: #{tpu_custom_call.1} parent=5 // pred_check
      _
    $region30: #{tpu_custom_call.1} parent=5 // pred_check_branch
      %161 = sbr.rel (%p158) target = $region32
    $region31: #{tpu_custom_call.1} parent=5 // pred_region
      %s162 = ssub.s32 %s9, 1
      %p163 = scmp.lt.s32.totalorder %s18, 1
      %s164 = scalar_select %p163, %s18, 1
      %p165 = scmp.lt.s32.totalorder %s19, 0
      %s166 = scalar_select %p165, %s19, 0
      %s167 = smul.addr %s166, 51
      %s168 = smul.addr %s164, 51
      %s169 = sadd.s32 %s167, %s168
      %s170 = smul.addr %s169, 4
      %s171 = scalar_lea.vmem %s0, %s170
      %p172 = pneg %p49
      %p173 = pneg %p46
      %p174 = pneg %p70
      %p175 = pneg %p67
      %p176 = pneg %p91
      %p177 = pneg %p88
      %p178 = pneg %p119
      %p179 = pneg %p116
      %p180 = scmp.lt.s32.totalorder %s18, 1
      %s181 = scalar_select %p180, %s18, 1
      %p182 = scmp.lt.s32.totalorder %s19, 0
      %s183 = scalar_select %p182, %s19, 0
      %s184 = smul.addr %s183, 12
      %s185 = smul.addr %s181, 12
      %s186 = sadd.s32 %s184, %s185
      %s187 = smul.addr %s186, 4
      %s188 = scalar_lea.vmem %s3, %s187
      %p189 = scmp.lt.s32.totalorder %s18, 1
      %s190 = scalar_select %p189, %s18, 1
      %p191 = scmp.lt.s32.totalorder %s19, 0
      %s192 = scalar_select %p191, %s19, 0
      %s193 = smul.addr %s192, 51
      %s194 = smul.addr %s190, 51
      %s195 = sadd.s32 %s193, %s194
      %s196 = smul.addr %s195, 4
      %s197 = scalar_lea.vmem %s0, %s196
      %p198 = scmp.lt.s32.totalorder %s18, 1
      %s199 = scalar_select %p198, %s18, 1
      %p200 = scmp.lt.s32.totalorder %s19, 0
      %s201 = scalar_select %p200, %s19, 0
      %s202 = smul.addr %s201, 12
      %s203 = smul.addr %s199, 12
      %s204 = sadd.s32 %s202, %s203
      %s205 = smul.addr %s204, 4
      %s206 = scalar_lea.vmem %s3, %s205
      %v208 = vld [vmem:[%s197] sm:$0xf]
      %v209 = vld [vmem:[%s197 + $0x4] sm:$0xf]
      %v210 = vld [vmem:[%s197 + $0x8] sm:$0xf]
      %v211 = vld [vmem:[%s197 + $0xc] sm:$0xf]
      %v212 = vld [vmem:[%s197 + $0x10] sm:$0xf]
      %v213 = vld [vmem:[%s197 + $0x14] sm:$0xf]
      %v214 = vld [vmem:[%s197 + $0x18] sm:$0xf]
      %v215 = vld [vmem:[%s197 + $0x1c] sm:$0xf]
      %v216 = vld [vmem:[%s197 + $0x20] sm:$0xf]
      %v217 = vld [vmem:[%s197 + $0x24] sm:$0xf]
      %v218 = vld [vmem:[%s197 + $0x28] sm:$0xf]
      %v219 = vld [vmem:[%s197 + $0x2c] sm:$0x1]
      %v220 = vld [vmem:[%s1] sm:$0xf]
      %v221 = vld [vmem:[%s197 + $0x30] sm:$0xc]
      %v222 = vld [vmem:[%s197 + $0x34] sm:$0xf]
      %v223 = vld [vmem:[%s197 + $0x38] sm:$0xf]
      %v224 = vld [vmem:[%s197 + $0x3c] sm:$0xf]
      %v225 = vld [vmem:[%s197 + $0x40] sm:$0xf]
      %v226 = vld [vmem:[%s197 + $0x44] sm:$0xf]
      %v227 = vld [vmem:[%s197 + $0x48] sm:$0xf]
      %v228 = vld [vmem:[%s197 + $0x4c] sm:$0xf]
      %v229 = vld [vmem:[%s197 + $0x50] sm:$0xf]
      %v230 = vld [vmem:[%s197 + $0x54] sm:$0xf]
      %v231 = vld [vmem:[%s197 + $0x58] sm:$0xf]
      %v232 = vld [vmem:[%s197 + $0x5c] sm:$0xf]
      %s233 = scalar_lea.vmem %s1, 4
      %v234 = vld [vmem:[%s233] sm:$0xf]
      %v247 = vunpack.c.l.b16 %v221
      %v248 = vunpack.c.l.b16 %v222
      %v249 = vunpack.c.l.b16 %v223
      %v250 = vunpack.c.l.b16 %v224
      %v251 = vunpack.c.l.b16 %v225
      %v252 = vunpack.c.l.b16 %v226
      %v253 = vunpack.c.l.b16 %v227
      %v254 = vunpack.c.l.b16 %v228
      %v255 = vunpack.c.l.b16 %v229
      %v256 = vunpack.c.l.b16 %v230
      %v257 = vunpack.c.l.b16 %v231
      %v258 = vunpack.c.l.b16 %v232
      %v259 = vpack.c.b16 %v248, %v247
      %v260 = vpack.c.b16 %v250, %v249
      %v261 = vpack.c.b16 %v252, %v251
      %v262 = vpack.c.b16 %v254, %v253
      %v263 = vpack.c.b16 %v256, %v255
      %v264 = vpack.c.b16 %v258, %v257
      %vm265 = vsmask.f32 5376
      %v267 = vshrl.u32 %v259, 16
      %v269 = vrot.slane %v267, 2
      %v270 = vshll.u32 %v259, 16
      %v272 = vrot.slane %v270, 3
      %v273 = vor.u32 %v269, %v272
      %v275 = vshrl.u32 %v260, 16
      %v277 = vrot.slane %v275, 2
      %v278 = vshll.u32 %v260, 16
      %v280 = vrot.slane %v278, 3
      %v281 = vor.u32 %v277, %v280
      %v282 = vsel %vm265, %v273, %v281
      %v284 = vshrl.u32 %v261, 16
      %v286 = vrot.slane %v284, 2
      %v287 = vshll.u32 %v261, 16
      %v289 = vrot.slane %v287, 3
      %v290 = vor.u32 %v286, %v289
      %v291 = vsel %vm265, %v281, %v290
      %v293 = vshrl.u32 %v262, 16
      %v295 = vrot.slane %v293, 2
      %v296 = vshll.u32 %v262, 16
      %v298 = vrot.slane %v296, 3
      %v299 = vor.u32 %v295, %v298
      %v300 = vsel %vm265, %v290, %v299
      %v302 = vshrl.u32 %v263, 16
      %v304 = vrot.slane %v302, 2
      %v305 = vshll.u32 %v263, 16
      %v307 = vrot.slane %v305, 3
      %v308 = vor.u32 %v304, %v307
      %v309 = vsel %vm265, %v299, %v308
      %v311 = vshrl.u32 %v264, 16
      %v313 = vrot.slane %v311, 2
      %v314 = vshll.u32 %v264, 16
      %v316 = vrot.slane %v314, 3
      %v317 = vor.u32 %v313, %v316
      %v318 = vsel %vm265, %v308, %v317
      %vm319 = vcmask 64512
      %v321 = vsel %vm319, %v282, 0
      %v324 = vsel %vm319, %v291, 0
      %v327 = vsel %vm319, %v300, 0
      %v330 = vsel %vm319, %v309, 0
      %v333 = vsel %vm319, %v318, 0
      %v336 = vsel %vm319, %v317, 0
      %vm338 = vcmask 1043456
      %v340 = vsel %vm338, %v234, 0
      %342 = vmatpush.bf16.msra.mxu0 0
      %343 = vmatpush.bf16.msra.mxu0 0
      %344 = vmatpush.bf16.msra.mxu0 0
      %345 = vmatpush.bf16.msra.mxu0 0
      %346 = vmatpush.bf16.msra.mxu0 0
      %347 = vmatpush.bf16.msra.mxu0 0
      %348 = vmatpush.bf16.msra.mxu0 0
      %349 = vmatpush.bf16.msra.mxu0 %v340
      %350 = vmatmul.bf16.gmra.mxu0 %v321
      %v351 = vpop.f32.mrf.mxu0
      %v352 = vadd.f32 0.0, %v351
      %v353 = vpop.f32.mrf.mxu0
      %v354 = vadd.f32 0.0, %v353
      %355 = vmatmul.bf16.gmra.mxu0 %v324
      %v356 = vpop.f32.mrf.mxu0
      %v357 = vadd.f32 0.0, %v356
      %v358 = vpop.f32.mrf.mxu0
      %v359 = vadd.f32 0.0, %v358
      %360 = vmatmul.bf16.gmra.mxu0 %v327
      %v361 = vpop.f32.mrf.mxu0
      %v362 = vadd.f32 0.0, %v361
      %v363 = vpop.f32.mrf.mxu0
      %v364 = vadd.f32 0.0, %v363
      %365 = vmatmul.bf16.gmra.mxu0 %v330
      %v366 = vpop.f32.mrf.mxu0
      %v367 = vadd.f32 0.0, %v366
      %v368 = vpop.f32.mrf.mxu0
      %v369 = vadd.f32 0.0, %v368
      %370 = vmatmul.bf16.gmra.mxu0 %v333
      %v371 = vpop.f32.mrf.mxu0
      %v372 = vadd.f32 0.0, %v371
      %v373 = vpop.f32.mrf.mxu0
      %v374 = vadd.f32 0.0, %v373
      %375 = vmatmul.bf16.gmra.mxu0 %v336
      %v376 = vpop.f32.mrf.mxu0
      %v377 = vadd.f32 0.0, %v376
      %v378 = vpop.f32.mrf.mxu0
      %v379 = vadd.f32 0.0, %v378
      %380 = vdwg.mxu0
      %v393 = vunpack.c.l.b16 %v208
      %v394 = vunpack.c.l.b16 %v209
      %v395 = vunpack.c.l.b16 %v210
      %v396 = vunpack.c.l.b16 %v211
      %v397 = vunpack.c.l.b16 %v212
      %v398 = vunpack.c.l.b16 %v213
      %v399 = vunpack.c.l.b16 %v214
      %v400 = vunpack.c.l.b16 %v215
      %v401 = vunpack.c.l.b16 %v216
      %v402 = vunpack.c.l.b16 %v217
      %v403 = vunpack.c.l.b16 %v218
      %v404 = vunpack.c.l.b16 %v219
      %v405 = vpack.c.b16 %v394, %v393
      %v406 = vpack.c.b16 %v396, %v395
      %v407 = vpack.c.b16 %v398, %v397
      %v408 = vpack.c.b16 %v400, %v399
      %v409 = vpack.c.b16 %v402, %v401
      %v410 = vpack.c.b16 %v404, %v403
      %v412 = vsel %vm319, %v405, 0
      %v415 = vsel %vm319, %v406, 0
      %v418 = vsel %vm319, %v407, 0
      %v421 = vsel %vm319, %v408, 0
      %v424 = vsel %vm319, %v409, 0
      %v427 = vsel %vm319, %v410, 0
      %v430 = vsel %vm338, %v220, 0
      %432 = vmatpush.bf16.msra.mxu0 0
      %433 = vmatpush.bf16.msra.mxu0 0
      %434 = vmatpush.bf16.msra.mxu0 0
      %435 = vmatpush.bf16.msra.mxu0 0
      %436 = vmatpush.bf16.msra.mxu0 0
      %437 = vmatpush.bf16.msra.mxu0 0
      %438 = vmatpush.bf16.msra.mxu0 0
      %439 = vmatpush.bf16.msra.mxu0 %v430
      %440 = vmatmul.bf16.gmra.mxu0 %v412
      %v441 = vpop.f32.mrf.mxu0
      %v442 = vadd.f32 %v352, %v441
      %v443 = vpop.f32.mrf.mxu0
      %v444 = vadd.f32 %v354, %v443
      %445 = vmatmul.bf16.gmra.mxu0 %v415
      %v446 = vpop.f32.mrf.mxu0
      %v447 = vadd.f32 %v357, %v446
      %v448 = vpop.f32.mrf.mxu0
      %v449 = vadd.f32 %v359, %v448
      %450 = vmatmul.bf16.gmra.mxu0 %v418
      %v451 = vpop.f32.mrf.mxu0
      %v452 = vadd.f32 %v362, %v451
      %v453 = vpop.f32.mrf.mxu0
      %v454 = vadd.f32 %v364, %v453
      %455 = vmatmul.bf16.gmra.mxu0 %v421
      %v456 = vpop.f32.mrf.mxu0
      %v457 = vadd.f32 %v367, %v456
      %v458 = vpop.f32.mrf.mxu0
      %v459 = vadd.f32 %v369, %v458
      %460 = vmatmul.bf16.gmra.mxu0 %v424
      %v461 = vpop.f32.mrf.mxu0
      %v462 = vadd.f32 %v372, %v461
      %v463 = vpop.f32.mrf.mxu0
      %v464 = vadd.f32 %v374, %v463
      %465 = vmatmul.bf16.gmra.mxu0 %v427
      %v466 = vpop.f32.mrf.mxu0
      %v467 = vadd.f32 %v377, %v466
      %v468 = vpop.f32.mrf.mxu0
      %v469 = vadd.f32 %v379, %v468
      %470 = vdwg.mxu0
      %v471 = vld [vmem:[%s197 + $0x2c] sm:$0x3]
      %s472 = scalar_lea.vmem %s1, 8
      %v473 = vld [vmem:[%s472] sm:$0xf]
      %v475 = vunpack.c.l.b16 %v471
      %v476 = vpack.c.b16 %v475, %v403
      %vm477 = vsmask.f32 7424
      %v478 = vshrl.u32 %v405, 16
      %v480 = vshll.u32 %v405, 16
      %v482 = vrot.slane %v480, 1
      %v483 = vor.u32 %v478, %v482
      %v484 = vshll.u32 %v406, 16
      %v486 = vrot.slane %v484, 1
      %v487 = vsel %vm477, %v483, %v486
      %v488 = vshrl.u32 %v406, 16
      %v490 = vor.u32 %v488, %v486
      %v491 = vshll.u32 %v407, 16
      %v493 = vrot.slane %v491, 1
      %v494 = vsel %vm477, %v490, %v493
      %v495 = vshrl.u32 %v407, 16
      %v497 = vor.u32 %v495, %v493
      %v498 = vshll.u32 %v408, 16
      %v500 = vrot.slane %v498, 1
      %v501 = vsel %vm477, %v497, %v500
      %v502 = vshrl.u32 %v408, 16
      %v504 = vor.u32 %v502, %v500
      %v505 = vshll.u32 %v409, 16
      %v507 = vrot.slane %v505, 1
      %v508 = vsel %vm477, %v504, %v507
      %v509 = vshrl.u32 %v409, 16
      %v511 = vor.u32 %v509, %v507
      %v513 = vshll.u32 %v476, 16
      %v515 = vrot.slane %v513, 1
      %v516 = vsel %vm477, %v511, %v515
      %v517 = vshrl.u32 %v476, 16
      %v519 = vor.u32 %v517, %v515
      %v521 = vsel %vm319, %v487, 0
      %v524 = vsel %vm319, %v494, 0
      %v527 = vsel %vm319, %v501, 0
      %v530 = vsel %vm319, %v508, 0
      %v533 = vsel %vm319, %v516, 0
      %v536 = vsel %vm319, %v519, 0
      %v539 = vsel %vm338, %v473, 0
      %541 = vmatpush.bf16.msra.mxu0 0
      %542 = vmatpush.bf16.msra.mxu0 0
      %543 = vmatpush.bf16.msra.mxu0 0
      %544 = vmatpush.bf16.msra.mxu0 0
      %545 = vmatpush.bf16.msra.mxu0 0
      %546 = vmatpush.bf16.msra.mxu0 0
      %547 = vmatpush.bf16.msra.mxu0 0
      %548 = vmatpush.bf16.msra.mxu0 %v539
      %549 = vmatmul.bf16.gmra.mxu0 %v521
      %v550 = vpop.f32.mrf.mxu0
      %v551 = vadd.f32 0.0, %v550
      %v552 = vpop.f32.mrf.mxu0
      %v553 = vadd.f32 0.0, %v552
      %554 = vmatmul.bf16.gmra.mxu0 %v524
      %v555 = vpop.f32.mrf.mxu0
      %v556 = vadd.f32 0.0, %v555
      %v557 = vpop.f32.mrf.mxu0
      %v558 = vadd.f32 0.0, %v557
      %559 = vmatmul.bf16.gmra.mxu0 %v527
      %v560 = vpop.f32.mrf.mxu0
      %v561 = vadd.f32 0.0, %v560
      %v562 = vpop.f32.mrf.mxu0
      %v563 = vadd.f32 0.0, %v562
      %564 = vmatmul.bf16.gmra.mxu0 %v530
      %v565 = vpop.f32.mrf.mxu0
      %v566 = vadd.f32 0.0, %v565
      %v567 = vpop.f32.mrf.mxu0
      %v568 = vadd.f32 0.0, %v567
      %569 = vmatmul.bf16.gmra.mxu0 %v533
      %v570 = vpop.f32.mrf.mxu0
      %v571 = vadd.f32 0.0, %v570
      %v572 = vpop.f32.mrf.mxu0
      %v573 = vadd.f32 0.0, %v572
      %574 = vmatmul.bf16.gmra.mxu0 %v536
      %v575 = vpop.f32.mrf.mxu0
      %v576 = vadd.f32 0.0, %v575
      %v577 = vpop.f32.mrf.mxu0
      %v578 = vadd.f32 0.0, %v577
      %579 = vdwg.mxu0
      %v580 = vadd.f32 %v442, %v551
      %v581 = vadd.f32 %v444, %v553
      %v582 = vadd.f32 %v447, %v556
      %v583 = vadd.f32 %v449, %v558
      %v584 = vadd.f32 %v452, %v561
      %v585 = vadd.f32 %v454, %v563
      %v586 = vadd.f32 %v457, %v566
      %v587 = vadd.f32 %v459, %v568
      %v588 = vadd.f32 %v462, %v571
      %v589 = vadd.f32 %v464, %v573
      %v590 = vadd.f32 %v467, %v576
      %v591 = vadd.f32 %v469, %v578
      %v592 = vld [vmem:[%s197 + $0x30] sm:$0x8]
      %s593 = scalar_lea.vmem %s1, 12
      %v594 = vld [vmem:[%s593] sm:$0xf]
      %v596 = vunpack.c.l.b16 %v592
      %v597 = vpack.c.b16 %v248, %v596
      %vm598 = vcmask 1044480
      %v599 = vrot.slane %v597, 3
      %v600 = vrot.slane %v260, 3
      %v601 = vsel %vm598, %v599, %v600
      %v602 = vrot.slane %v261, 3
      %v603 = vsel %vm598, %v600, %v602
      %v604 = vrot.slane %v262, 3
      %v605 = vsel %vm598, %v602, %v604
      %v606 = vrot.slane %v263, 3
      %v607 = vsel %vm598, %v604, %v606
      %v608 = vrot.slane %v264, 3
      %v609 = vsel %vm598, %v606, %v608
      %v611 = vsel %vm319, %v601, 0
      %v614 = vsel %vm319, %v603, 0
      %v617 = vsel %vm319, %v605, 0
      %v620 = vsel %vm319, %v607, 0
      %v623 = vsel %vm319, %v609, 0
      %v626 = vsel %vm319, %v608, 0
      %v629 = vsel %vm338, %v594, 0
      %631 = vmatpush.bf16.msra.mxu0 0
      %632 = vmatpush.bf16.msra.mxu0 0
      %633 = vmatpush.bf16.msra.mxu0 0
      %634 = vmatpush.bf16.msra.mxu0 0
      %635 = vmatpush.bf16.msra.mxu0 0
      %636 = vmatpush.bf16.msra.mxu0 0
      %637 = vmatpush.bf16.msra.mxu0 0
      %638 = vmatpush.bf16.msra.mxu0 %v629
      %639 = vmatmul.bf16.gmra.mxu0 %v611
      %v640 = vpop.f32.mrf.mxu0
      %v641 = vadd.f32 0.0, %v640
      %v642 = vpop.f32.mrf.mxu0
      %v643 = vadd.f32 0.0, %v642
      %644 = vmatmul.bf16.gmra.mxu0 %v614
      %v645 = vpop.f32.mrf.mxu0
      %v646 = vadd.f32 0.0, %v645
      %v647 = vpop.f32.mrf.mxu0
      %v648 = vadd.f32 0.0, %v647
      %649 = vmatmul.bf16.gmra.mxu0 %v617
      %v650 = vpop.f32.mrf.mxu0
      %v651 = vadd.f32 0.0, %v650
      %v652 = vpop.f32.mrf.mxu0
      %v653 = vadd.f32 0.0, %v652
      %654 = vmatmul.bf16.gmra.mxu0 %v620
      %v655 = vpop.f32.mrf.mxu0
      %v656 = vadd.f32 0.0, %v655
      %v657 = vpop.f32.mrf.mxu0
      %v658 = vadd.f32 0.0, %v657
      %659 = vmatmul.bf16.gmra.mxu0 %v623
      %v660 = vpop.f32.mrf.mxu0
      %v661 = vadd.f32 0.0, %v660
      %v662 = vpop.f32.mrf.mxu0
      %v663 = vadd.f32 0.0, %v662
      %664 = vmatmul.bf16.gmra.mxu0 %v626
      %v665 = vpop.f32.mrf.mxu0
      %v666 = vadd.f32 0.0, %v665
      %v667 = vpop.f32.mrf.mxu0
      %v668 = vadd.f32 0.0, %v667
      %669 = vdwg.mxu0
      %v670 = vadd.f32 %v580, %v641
      %v671 = vadd.f32 %v581, %v643
      %v672 = vadd.f32 %v582, %v646
      %v673 = vadd.f32 %v583, %v648
      %v674 = vadd.f32 %v584, %v651
      %v675 = vadd.f32 %v585, %v653
      %v676 = vadd.f32 %v586, %v656
      %v677 = vadd.f32 %v587, %v658
      %v678 = vadd.f32 %v588, %v661
      %v679 = vadd.f32 %v589, %v663
      %v680 = vadd.f32 %v590, %v666
      %v681 = vadd.f32 %v591, %v668
      %v682 = vld [vmem:[%s197 + $0x64] sm:$0xe]
      %v683 = vld [vmem:[%s197 + $0x68] sm:$0xf]
      %v684 = vld [vmem:[%s197 + $0x6c] sm:$0xf]
      %v685 = vld [vmem:[%s197 + $0x70] sm:$0xf]
      %v686 = vld [vmem:[%s197 + $0x74] sm:$0xf]
      %v687 = vld [vmem:[%s197 + $0x78] sm:$0xf]
      %v688 = vld [vmem:[%s197 + $0x7c] sm:$0xf]
      %v689 = vld [vmem:[%s197 + $0x80] sm:$0xf]
      %v690 = vld [vmem:[%s197 + $0x84] sm:$0xf]
      %v691 = vld [vmem:[%s197 + $0x88] sm:$0xf]
      %v692 = vld [vmem:[%s197 + $0x8c] sm:$0xf]
      %v693 = vld [vmem:[%s197 + $0x90] sm:$0x3]
      %s694 = scalar_lea.vmem %s1, 16
      %v695 = vld [vmem:[%s694] sm:$0xf]
      %v708 = vunpack.c.l.b16 %v682
      %v709 = vunpack.c.l.b16 %v683
      %v710 = vunpack.c.l.b16 %v684
      %v711 = vunpack.c.l.b16 %v685
      %v712 = vunpack.c.l.b16 %v686
      %v713 = vunpack.c.l.b16 %v687
      %v714 = vunpack.c.l.b16 %v688
      %v715 = vunpack.c.l.b16 %v689
      %v716 = vunpack.c.l.b16 %v690
      %v717 = vunpack.c.l.b16 %v691
      %v718 = vunpack.c.l.b16 %v692
      %v719 = vunpack.c.l.b16 %v693
      %v720 = vpack.c.b16 %v709, %v708
      %v721 = vpack.c.b16 %v711, %v710
      %v722 = vpack.c.b16 %v713, %v712
      %v723 = vpack.c.b16 %v715, %v714
      %v724 = vpack.c.b16 %v717, %v716
      %v725 = vpack.c.b16 %v719, %v718
      %vm726 = vcmask 1046528
      %v727 = vrot.slane %v720, 1
      %v728 = vrot.slane %v721, 1
      %v729 = vsel %vm726, %v727, %v728
      %v730 = vrot.slane %v722, 1
      %v731 = vsel %vm726, %v728, %v730
      %v732 = vrot.slane %v723, 1
      %v733 = vsel %vm726, %v730, %v732
      %v734 = vrot.slane %v724, 1
      %v735 = vsel %vm726, %v732, %v734
      %v736 = vrot.slane %v725, 1
      %v737 = vsel %vm726, %v734, %v736
      %v739 = vsel %vm319, %v729, 0
      %v742 = vsel %vm319, %v731, 0
      %v745 = vsel %vm319, %v733, 0
      %v748 = vsel %vm319, %v735, 0
      %v751 = vsel %vm319, %v737, 0
      %v754 = vsel %vm319, %v736, 0
      %v757 = vsel %vm338, %v695, 0
      %759 = vmatpush.bf16.msra.mxu0 0
      %760 = vmatpush.bf16.msra.mxu0 0
      %761 = vmatpush.bf16.msra.mxu0 0
      %762 = vmatpush.bf16.msra.mxu0 0
      %763 = vmatpush.bf16.msra.mxu0 0
      %764 = vmatpush.bf16.msra.mxu0 0
      %765 = vmatpush.bf16.msra.mxu0 0
      %766 = vmatpush.bf16.msra.mxu0 %v757
      %767 = vmatmul.bf16.gmra.mxu0 %v739
      %v768 = vpop.f32.mrf.mxu0
      %v769 = vadd.f32 0.0, %v768
      %v770 = vpop.f32.mrf.mxu0
      %v771 = vadd.f32 0.0, %v770
      %772 = vmatmul.bf16.gmra.mxu0 %v742
      %v773 = vpop.f32.mrf.mxu0
      %v774 = vadd.f32 0.0, %v773
      %v775 = vpop.f32.mrf.mxu0
      %v776 = vadd.f32 0.0, %v775
      %777 = vmatmul.bf16.gmra.mxu0 %v745
      %v778 = vpop.f32.mrf.mxu0
      %v779 = vadd.f32 0.0, %v778
      %v780 = vpop.f32.mrf.mxu0
      %v781 = vadd.f32 0.0, %v780
      %782 = vmatmul.bf16.gmra.mxu0 %v748
      %v783 = vpop.f32.mrf.mxu0
      %v784 = vadd.f32 0.0, %v783
      %v785 = vpop.f32.mrf.mxu0
      %v786 = vadd.f32 0.0, %v785
      %787 = vmatmul.bf16.gmra.mxu0 %v751
      %v788 = vpop.f32.mrf.mxu0
      %v789 = vadd.f32 0.0, %v788
      %v790 = vpop.f32.mrf.mxu0
      %v791 = vadd.f32 0.0, %v790
      %792 = vmatmul.bf16.gmra.mxu0 %v754
      %v793 = vpop.f32.mrf.mxu0
      %v794 = vadd.f32 0.0, %v793
      %v795 = vpop.f32.mrf.mxu0
      %v796 = vadd.f32 0.0, %v795
      %797 = vdwg.mxu0
      %v798 = vadd.f32 %v670, %v769
      %v799 = vadd.f32 %v671, %v771
      %v800 = vadd.f32 %v672, %v774
      %v801 = vadd.f32 %v673, %v776
      %v802 = vadd.f32 %v674, %v779
      %v803 = vadd.f32 %v675, %v781
      %v804 = vadd.f32 %v676, %v784
      %v805 = vadd.f32 %v677, %v786
      %v806 = vadd.f32 %v678, %v789
      %v807 = vadd.f32 %v679, %v791
      %v808 = vadd.f32 %v680, %v794
      %v809 = vadd.f32 %v681, %v796
      %v810 = vld [vmem:[%s197 + $0x94] sm:$0x8]
      %v811 = vld [vmem:[%s197 + $0x98] sm:$0xf]
      %v812 = vld [vmem:[%s197 + $0x9c] sm:$0xf]
      %v813 = vld [vmem:[%s197 + $0xa0] sm:$0xf]
      %v814 = vld [vmem:[%s197 + $0xa4] sm:$0xf]
      %v815 = vld [vmem:[%s197 + $0xa8] sm:$0xf]
      %v816 = vld [vmem:[%s197 + $0xac] sm:$0xf]
      %v817 = vld [vmem:[%s197 + $0xb0] sm:$0xf]
      %v818 = vld [vmem:[%s197 + $0xb4] sm:$0xf]
      %v819 = vld [vmem:[%s197 + $0xb8] sm:$0xf]
      %v820 = vld [vmem:[%s197 + $0xbc] sm:$0xf]
      %v821 = vld [vmem:[%s197 + $0xc0] sm:$0xf]
      %v822 = vld [vmem:[%s197 + $0xc4] sm:$0x1]
      %s823 = scalar_lea.vmem %s1, 20
      %v824 = vld [vmem:[%s823] sm:$0xf]
      %v838 = vunpack.c.l.b16 %v810
      %v839 = vunpack.c.l.b16 %v811
      %v840 = vunpack.c.l.b16 %v812
      %v841 = vunpack.c.l.b16 %v813
      %v842 = vunpack.c.l.b16 %v814
      %v843 = vunpack.c.l.b16 %v815
      %v844 = vunpack.c.l.b16 %v816
      %v845 = vunpack.c.l.b16 %v817
      %v846 = vunpack.c.l.b16 %v818
      %v847 = vunpack.c.l.b16 %v819
      %v848 = vunpack.c.l.b16 %v820
      %v849 = vunpack.c.l.b16 %v821
      %v850 = vunpack.c.l.b16 %v822
      %v851 = vpack.c.b16 %v839, %v838
      %v852 = vpack.c.b16 %v841, %v840
      %v853 = vpack.c.b16 %v843, %v842
      %v854 = vpack.c.b16 %v845, %v844
      %v855 = vpack.c.b16 %v847, %v846
      %v856 = vpack.c.b16 %v849, %v848
      %v857 = vpack.c.b16 %v850, %v850
      %vm858 = vsmask.f32 4352
      %v860 = vshrl.u32 %v851, 16
      %v862 = vrot.slane %v860, 3
      %v863 = vshll.u32 %v851, 16
      %v865 = vrot.slane %v863, 4
      %v866 = vor.u32 %v862, %v865
      %v868 = vshrl.u32 %v852, 16
      %v870 = vrot.slane %v868, 3
      %v871 = vshll.u32 %v852, 16
      %v873 = vrot.slane %v871, 4
      %v874 = vor.u32 %v870, %v873
      %v875 = vsel %vm858, %v866, %v874
      %v877 = vshrl.u32 %v853, 16
      %v879 = vrot.slane %v877, 3
      %v880 = vshll.u32 %v853, 16
      %v882 = vrot.slane %v880, 4
      %v883 = vor.u32 %v879, %v882
      %v884 = vsel %vm858, %v874, %v883
      %v886 = vshrl.u32 %v854, 16
      %v888 = vrot.slane %v886, 3
      %v889 = vshll.u32 %v854, 16
      %v891 = vrot.slane %v889, 4
      %v892 = vor.u32 %v888, %v891
      %v893 = vsel %vm858, %v883, %v892
      %v895 = vshrl.u32 %v855, 16
      %v897 = vrot.slane %v895, 3
      %v898 = vshll.u32 %v855, 16
      %v900 = vrot.slane %v898, 4
      %v901 = vor.u32 %v897, %v900
      %v902 = vsel %vm858, %v892, %v901
      %v904 = vshrl.u32 %v856, 16
      %v906 = vrot.slane %v904, 3
      %v907 = vshll.u32 %v856, 16
      %v909 = vrot.slane %v907, 4
      %v910 = vor.u32 %v906, %v909
      %v911 = vsel %vm858, %v901, %v910
      %v913 = vshll.u32 %v857, 16
      %v915 = vrot.slane %v913, 4
      %v916 = vsel %vm858, %v910, %v915
      %v918 = vsel %vm319, %v875, 0
      %v921 = vsel %vm319, %v884, 0
      %v924 = vsel %vm319, %v893, 0
      %v927 = vsel %vm319, %v902, 0
      %v930 = vsel %vm319, %v911, 0
      %v933 = vsel %vm319, %v916, 0
      %v936 = vsel %vm338, %v824, 0
      %938 = vmatpush.bf16.msra.mxu0 0
      %939 = vmatpush.bf16.msra.mxu0 0
      %940 = vmatpush.bf16.msra.mxu0 0
      %941 = vmatpush.bf16.msra.mxu0 0
      %942 = vmatpush.bf16.msra.mxu0 0
      %943 = vmatpush.bf16.msra.mxu0 0
      %944 = vmatpush.bf16.msra.mxu0 0
      %945 = vmatpush.bf16.msra.mxu0 %v936
      %946 = vmatmul.bf16.gmra.mxu0 %v918
      %v947 = vpop.f32.mrf.mxu0
      %v948 = vadd.f32 0.0, %v947
      %v949 = vpop.f32.mrf.mxu0
      %v950 = vadd.f32 0.0, %v949
      %951 = vmatmul.bf16.gmra.mxu0 %v921
      %v952 = vpop.f32.mrf.mxu0
      %v953 = vadd.f32 0.0, %v952
      %v954 = vpop.f32.mrf.mxu0
      %v955 = vadd.f32 0.0, %v954
      %956 = vmatmul.bf16.gmra.mxu0 %v924
      %v957 = vpop.f32.mrf.mxu0
      %v958 = vadd.f32 0.0, %v957
      %v959 = vpop.f32.mrf.mxu0
      %v960 = vadd.f32 0.0, %v959
      %961 = vmatmul.bf16.gmra.mxu0 %v927
      %v962 = vpop.f32.mrf.mxu0
      %v963 = vadd.f32 0.0, %v962
      %v964 = vpop.f32.mrf.mxu0
      %v965 = vadd.f32 0.0, %v964
      %966 = vmatmul.bf16.gmra.mxu0 %v930
      %v967 = vpop.f32.mrf.mxu0
      %v968 = vadd.f32 0.0, %v967
      %v969 = vpop.f32.mrf.mxu0
      %v970 = vadd.f32 0.0, %v969
      %971 = vmatmul.bf16.gmra.mxu0 %v933
      %v972 = vpop.f32.mrf.mxu0
      %v973 = vadd.f32 0.0, %v972
      %v974 = vpop.f32.mrf.mxu0
      %v975 = vadd.f32 0.0, %v974
      %976 = vdwg.mxu0
      %v977 = vadd.f32 %v798, %v948
      %v978 = vadd.f32 %v799, %v950
      %v979 = vadd.f32 %v800, %v953
      %v980 = vadd.f32 %v801, %v955
      %v981 = vadd.f32 %v802, %v958
      %v982 = vadd.f32 %v803, %v960
      %v983 = vadd.f32 %v804, %v963
      %v984 = vadd.f32 %v805, %v965
      %v985 = vadd.f32 %v806, %v968
      %v986 = vadd.f32 %v807, %v970
      %v987 = vadd.f32 %v808, %v973
      %v988 = vadd.f32 %v809, %v975
      %v989 = vld [vmem:[%s197 + $0x90] sm:$0x7]
      %s990 = scalar_lea.vmem %s1, 24
      %v991 = vld [vmem:[%s990] sm:$0xf]
      %v993 = vunpack.c.l.b16 %v989
      %v994 = vpack.c.b16 %v993, %v718
      %vm995 = vsmask.f32 6400
      %v997 = vshrl.u32 %v720, 16
      %v999 = vrot.slane %v997, 1
      %v1000 = vshll.u32 %v720, 16
      %v1002 = vrot.slane %v1000, 2
      %v1003 = vor.u32 %v999, %v1002
      %v1005 = vshrl.u32 %v721, 16
      %v1007 = vrot.slane %v1005, 1
      %v1008 = vshll.u32 %v721, 16
      %v1010 = vrot.slane %v1008, 2
      %v1011 = vor.u32 %v1007, %v1010
      %v1012 = vsel %vm995, %v1003, %v1011
      %v1014 = vshrl.u32 %v722, 16
      %v1016 = vrot.slane %v1014, 1
      %v1017 = vshll.u32 %v722, 16
      %v1019 = vrot.slane %v1017, 2
      %v1020 = vor.u32 %v1016, %v1019
      %v1021 = vsel %vm995, %v1011, %v1020
      %v1023 = vshrl.u32 %v723, 16
      %v1025 = vrot.slane %v1023, 1
      %v1026 = vshll.u32 %v723, 16
      %v1028 = vrot.slane %v1026, 2
      %v1029 = vor.u32 %v1025, %v1028
      %v1030 = vsel %vm995, %v1020, %v1029
      %v1032 = vshrl.u32 %v724, 16
      %v1034 = vrot.slane %v1032, 1
      %v1035 = vshll.u32 %v724, 16
      %v1037 = vrot.slane %v1035, 2
      %v1038 = vor.u32 %v1034, %v1037
      %v1039 = vsel %vm995, %v1029, %v1038
      %v1041 = vshrl.u32 %v994, 16
      %v1043 = vrot.slane %v1041, 1
      %v1044 = vshll.u32 %v994, 16
      %v1046 = vrot.slane %v1044, 2
      %v1047 = vor.u32 %v1043, %v1046
      %v1048 = vsel %vm995, %v1038, %v1047
      %v1050 = vsel %vm319, %v1012, 0
      %v1053 = vsel %vm319, %v1021, 0
      %v1056 = vsel %vm319, %v1030, 0
      %v1059 = vsel %vm319, %v1039, 0
      %v1062 = vsel %vm319, %v1048, 0
      %v1065 = vsel %vm319, %v1047, 0
      %v1068 = vsel %vm338, %v991, 0
      %1070 = vmatpush.bf16.msra.mxu0 0
      %1071 = vmatpush.bf16.msra.mxu0 0
      %1072 = vmatpush.bf16.msra.mxu0 0
      %1073 = vmatpush.bf16.msra.mxu0 0
      %1074 = vmatpush.bf16.msra.mxu0 0
      %1075 = vmatpush.bf16.msra.mxu0 0
      %1076 = vmatpush.bf16.msra.mxu0 0
      %1077 = vmatpush.bf16.msra.mxu0 %v1068
      %1078 = vmatmul.bf16.gmra.mxu0 %v1050
      %v1079 = vpop.f32.mrf.mxu0
      %v1080 = vadd.f32 0.0, %v1079
      %v1081 = vpop.f32.mrf.mxu0
      %v1082 = vadd.f32 0.0, %v1081
      %1083 = vmatmul.bf16.gmra.mxu0 %v1053
      %v1084 = vpop.f32.mrf.mxu0
      %v1085 = vadd.f32 0.0, %v1084
      %v1086 = vpop.f32.mrf.mxu0
      %v1087 = vadd.f32 0.0, %v1086
      %1088 = vmatmul.bf16.gmra.mxu0 %v1056
      %v1089 = vpop.f32.mrf.mxu0
      %v1090 = vadd.f32 0.0, %v1089
      %v1091 = vpop.f32.mrf.mxu0
      %v1092 = vadd.f32 0.0, %v1091
      %1093 = vmatmul.bf16.gmra.mxu0 %v1059
      %v1094 = vpop.f32.mrf.mxu0
      %v1095 = vadd.f32 0.0, %v1094
      %v1096 = vpop.f32.mrf.mxu0
      %v1097 = vadd.f32 0.0, %v1096
      %1098 = vmatmul.bf16.gmra.mxu0 %v1062
      %v1099 = vpop.f32.mrf.mxu0
      %v1100 = vadd.f32 0.0, %v1099
      %v1101 = vpop.f32.mrf.mxu0
      %v1102 = vadd.f32 0.0, %v1101
      %1103 = vmatmul.bf16.gmra.mxu0 %v1065
      %v1104 = vpop.f32.mrf.mxu0
      %v1105 = vadd.f32 0.0, %v1104
      %v1106 = vpop.f32.mrf.mxu0
      %v1107 = vadd.f32 0.0, %v1106
      %1108 = vdwg.mxu0
      %v1109 = vadd.f32 %v977, %v1080
      %v1110 = vadd.f32 %v978, %v1082
      %v1111 = vadd.f32 %v979, %v1085
      %v1112 = vadd.f32 %v980, %v1087
      %v1113 = vadd.f32 %v981, %v1090
      %v1114 = vadd.f32 %v982, %v1092
      %v1115 = vadd.f32 %v983, %v1095
      %v1116 = vadd.f32 %v984, %v1097
      %v1117 = vadd.f32 %v985, %v1100
      %v1118 = vadd.f32 %v986, %v1102
      %v1119 = vadd.f32 %v987, %v1105
      %v1120 = vadd.f32 %v988, %v1107
      %s1121 = scalar_lea.vmem %s1, 28
      %v1122 = vld [vmem:[%s1121] sm:$0xf]
      %v1123 = vpack.c.b16 %v840, %v839
      %v1124 = vpack.c.b16 %v842, %v841
      %v1125 = vpack.c.b16 %v844, %v843
      %v1126 = vpack.c.b16 %v846, %v845
      %v1127 = vpack.c.b16 %v848, %v847
      %v1128 = vpack.c.b16 %v850, %v849
      %v1130 = vsel %vm319, %v1123, 0
      %v1133 = vsel %vm319, %v1124, 0
      %v1136 = vsel %vm319, %v1125, 0
      %v1139 = vsel %vm319, %v1126, 0
      %v1142 = vsel %vm319, %v1127, 0
      %v1145 = vsel %vm319, %v1128, 0
      %v1148 = vsel %vm338, %v1122, 0
      %1150 = vmatpush.bf16.msra.mxu0 0
      %1151 = vmatpush.bf16.msra.mxu0 0
      %1152 = vmatpush.bf16.msra.mxu0 0
      %1153 = vmatpush.bf16.msra.mxu0 0
      %1154 = vmatpush.bf16.msra.mxu0 0
      %1155 = vmatpush.bf16.msra.mxu0 0
      %1156 = vmatpush.bf16.msra.mxu0 0
      %1157 = vmatpush.bf16.msra.mxu0 %v1148
      %1158 = vmatmul.bf16.gmra.mxu0 %v1130
      %v1159 = vpop.f32.mrf.mxu0
      %v1160 = vadd.f32 0.0, %v1159
      %v1161 = vpop.f32.mrf.mxu0
      %v1162 = vadd.f32 0.0, %v1161
      %1163 = vmatmul.bf16.gmra.mxu0 %v1133
      %v1164 = vpop.f32.mrf.mxu0
      %v1165 = vadd.f32 0.0, %v1164
      %v1166 = vpop.f32.mrf.mxu0
      %v1167 = vadd.f32 0.0, %v1166
      %1168 = vmatmul.bf16.gmra.mxu0 %v1136
      %v1169 = vpop.f32.mrf.mxu0
      %v1170 = vadd.f32 0.0, %v1169
      %v1171 = vpop.f32.mrf.mxu0
      %v1172 = vadd.f32 0.0, %v1171
      %1173 = vmatmul.bf16.gmra.mxu0 %v1139
      %v1174 = vpop.f32.mrf.mxu0
      %v1175 = vadd.f32 0.0, %v1174
      %v1176 = vpop.f32.mrf.mxu0
      %v1177 = vadd.f32 0.0, %v1176
      %1178 = vmatmul.bf16.gmra.mxu0 %v1142
      %v1179 = vpop.f32.mrf.mxu0
      %v1180 = vadd.f32 0.0, %v1179
      %v1181 = vpop.f32.mrf.mxu0
      %v1182 = vadd.f32 0.0, %v1181
      %1183 = vmatmul.bf16.gmra.mxu0 %v1145
      %v1184 = vpop.f32.mrf.mxu0
      %v1185 = vadd.f32 0.0, %v1184
      %v1186 = vpop.f32.mrf.mxu0
      %v1187 = vadd.f32 0.0, %v1186
      %1188 = vdwg.mxu0
      %v1189 = vadd.f32 %v1109, %v1160
      %v1190 = vadd.f32 %v1110, %v1162
      %v1191 = vadd.f32 %v1111, %v1165
      %v1192 = vadd.f32 %v1112, %v1167
      %v1193 = vadd.f32 %v1113, %v1170
      %v1194 = vadd.f32 %v1114, %v1172
      %v1195 = vadd.f32 %v1115, %v1175
      %v1196 = vadd.f32 %v1116, %v1177
      %v1197 = vadd.f32 %v1117, %v1180
      %v1198 = vadd.f32 %v1118, %v1182
      %v1199 = vadd.f32 %v1119, %v1185
      %v1200 = vadd.f32 %v1120, %v1187
      %v1201 = vld [vmem:[%s197 + $0x4] sm:$0xe]
      %v1202 = vld [vmem:[%s197 + $0x8] sm:$0xf]
      %v1203 = vld [vmem:[%s197 + $0xc] sm:$0xf]
      %v1204 = vld [vmem:[%s197 + $0x10] sm:$0xf]
      %v1205 = vld [vmem:[%s197 + $0x14] sm:$0xf]
      %v1206 = vld [vmem:[%s197 + $0x18] sm:$0xf]
      %v1207 = vld [vmem:[%s197 + $0x1c] sm:$0xf]
      %v1208 = vld [vmem:[%s197 + $0x20] sm:$0xf]
      %v1209 = vld [vmem:[%s197 + $0x24] sm:$0xf]
      %v1210 = vld [vmem:[%s197 + $0x28] sm:$0xf]
      %v1211 = vld [vmem:[%s197 + $0x2c] sm:$0xf]
      %v1212 = vld [vmem:[%s197 + $0x30] sm:$0x3]
      %s1213 = scalar_lea.vmem %s1, 32
      %v1214 = vld [vmem:[%s1213] sm:$0xf]
      %v1227 = vunpack.c.l.b16 %v1201
      %v1228 = vunpack.c.l.b16 %v1202
      %v1229 = vunpack.c.l.b16 %v1203
      %v1230 = vunpack.c.l.b16 %v1204
      %v1231 = vunpack.c.l.b16 %v1205
      %v1232 = vunpack.c.l.b16 %v1206
      %v1233 = vunpack.c.l.b16 %v1207
      %v1234 = vunpack.c.l.b16 %v1208
      %v1235 = vunpack.c.l.b16 %v1209
      %v1236 = vunpack.c.l.b16 %v1210
      %v1237 = vunpack.c.l.b16 %v1211
      %v1238 = vunpack.c.l.b16 %v1212
      %v1239 = vpack.c.b16 %v1228, %v1227
      %v1240 = vpack.c.b16 %v1230, %v1229
      %v1241 = vpack.c.b16 %v1232, %v1231
      %v1242 = vpack.c.b16 %v1234, %v1233
      %v1243 = vpack.c.b16 %v1236, %v1235
      %v1244 = vpack.c.b16 %v1238, %v1237
      %v1245 = vrot.slane %v1239, 1
      %v1246 = vrot.slane %v1240, 1
      %v1247 = vsel %vm726, %v1245, %v1246
      %v1248 = vrot.slane %v1241, 1
      %v1249 = vsel %vm726, %v1246, %v1248
      %v1250 = vrot.slane %v1242, 1
      %v1251 = vsel %vm726, %v1248, %v1250
      %v1252 = vrot.slane %v1243, 1
      %v1253 = vsel %vm726, %v1250, %v1252
      %v1254 = vrot.slane %v1244, 1
      %v1255 = vsel %vm726, %v1252, %v1254
      %v1257 = vsel %vm319, %v1247, 0
      %v1260 = vsel %vm319, %v1249, 0
      %v1263 = vsel %vm319, %v1251, 0
      %v1266 = vsel %vm319, %v1253, 0
      %v1269 = vsel %vm319, %v1255, 0
      %v1272 = vsel %vm319, %v1254, 0
      %v1275 = vsel %vm338, %v1214, 0
      %1277 = vmatpush.bf16.msra.mxu0 0
      %1278 = vmatpush.bf16.msra.mxu0 0
      %1279 = vmatpush.bf16.msra.mxu0 0
      %1280 = vmatpush.bf16.msra.mxu0 0
      %1281 = vmatpush.bf16.msra.mxu0 0
      %1282 = vmatpush.bf16.msra.mxu0 0
      %1283 = vmatpush.bf16.msra.mxu0 0
      %1284 = vmatpush.bf16.msra.mxu0 %v1275
      %1285 = vmatmul.bf16.gmra.mxu0 %v1257
      %v1286 = vpop.f32.mrf.mxu0
      %v1287 = vadd.f32 0.0, %v1286
      %v1288 = vpop.f32.mrf.mxu0
      %v1289 = vadd.f32 0.0, %v1288
      %1290 = vmatmul.bf16.gmra.mxu0 %v1260
      %v1291 = vpop.f32.mrf.mxu0
      %v1292 = vadd.f32 0.0, %v1291
      %v1293 = vpop.f32.mrf.mxu0
      %v1294 = vadd.f32 0.0, %v1293
      %1295 = vmatmul.bf16.gmra.mxu0 %v1263
      %v1296 = vpop.f32.mrf.mxu0
      %v1297 = vadd.f32 0.0, %v1296
      %v1298 = vpop.f32.mrf.mxu0
      %v1299 = vadd.f32 0.0, %v1298
      %1300 = vmatmul.bf16.gmra.mxu0 %v1266
      %v1301 = vpop.f32.mrf.mxu0
      %v1302 = vadd.f32 0.0, %v1301
      %v1303 = vpop.f32.mrf.mxu0
      %v1304 = vadd.f32 0.0, %v1303
      %1305 = vmatmul.bf16.gmra.mxu0 %v1269
      %v1306 = vpop.f32.mrf.mxu0
      %v1307 = vadd.f32 0.0, %v1306
      %v1308 = vpop.f32.mrf.mxu0
      %v1309 = vadd.f32 0.0, %v1308
      %1310 = vmatmul.bf16.gmra.mxu0 %v1272
      %v1311 = vpop.f32.mrf.mxu0
      %v1312 = vadd.f32 0.0, %v1311
      %v1313 = vpop.f32.mrf.mxu0
      %v1314 = vadd.f32 0.0, %v1313
      %1315 = vdwg.mxu0
      %v1316 = vadd.f32 %v1189, %v1287
      %v1317 = vadd.f32 %v1190, %v1289
      %v1318 = vadd.f32 %v1191, %v1292
      %v1319 = vadd.f32 %v1192, %v1294
      %v1320 = vadd.f32 %v1193, %v1297
      %v1321 = vadd.f32 %v1194, %v1299
      %v1322 = vadd.f32 %v1195, %v1302
      %v1323 = vadd.f32 %v1196, %v1304
      %v1324 = vadd.f32 %v1197, %v1307
      %v1325 = vadd.f32 %v1198, %v1309
      %v1326 = vadd.f32 %v1199, %v1312
      %v1327 = vadd.f32 %v1200, %v1314
      %v1328 = vld [vmem:[%s197 + $0x34] sm:$0x8]
      %v1329 = vld [vmem:[%s197 + $0x38] sm:$0xf]
      %v1330 = vld [vmem:[%s197 + $0x3c] sm:$0xf]
      %v1331 = vld [vmem:[%s197 + $0x40] sm:$0xf]
      %v1332 = vld [vmem:[%s197 + $0x44] sm:$0xf]
      %v1333 = vld [vmem:[%s197 + $0x48] sm:$0xf]
      %v1334 = vld [vmem:[%s197 + $0x4c] sm:$0xf]
      %v1335 = vld [vmem:[%s197 + $0x50] sm:$0xf]
      %v1336 = vld [vmem:[%s197 + $0x54] sm:$0xf]
      %v1337 = vld [vmem:[%s197 + $0x58] sm:$0xf]
      %v1338 = vld [vmem:[%s197 + $0x5c] sm:$0xf]
      %v1339 = vld [vmem:[%s197 + $0x60] sm:$0xf]
      %v1340 = vld [vmem:[%s197 + $0x64] sm:$0x1]
      %s1341 = scalar_lea.vmem %s1, 36
      %v1342 = vld [vmem:[%s1341] sm:$0xf]
      %v1356 = vunpack.c.l.b16 %v1328
      %v1357 = vunpack.c.l.b16 %v1329
      %v1358 = vunpack.c.l.b16 %v1330
      %v1359 = vunpack.c.l.b16 %v1331
      %v1360 = vunpack.c.l.b16 %v1332
      %v1361 = vunpack.c.l.b16 %v1333
      %v1362 = vunpack.c.l.b16 %v1334
      %v1363 = vunpack.c.l.b16 %v1335
      %v1364 = vunpack.c.l.b16 %v1336
      %v1365 = vunpack.c.l.b16 %v1337
      %v1366 = vunpack.c.l.b16 %v1338
      %v1367 = vunpack.c.l.b16 %v1339
      %v1368 = vunpack.c.l.b16 %v1340
      %v1369 = vpack.c.b16 %v1357, %v1356
      %v1370 = vpack.c.b16 %v1359, %v1358
      %v1371 = vpack.c.b16 %v1361, %v1360
      %v1372 = vpack.c.b16 %v1363, %v1362
      %v1373 = vpack.c.b16 %v1365, %v1364
      %v1374 = vpack.c.b16 %v1367, %v1366
      %v1375 = vpack.c.b16 %v1368, %v1368
      %v1377 = vshrl.u32 %v1369, 16
      %v1379 = vrot.slane %v1377, 3
      %v1380 = vshll.u32 %v1369, 16
      %v1382 = vrot.slane %v1380, 4
      %v1383 = vor.u32 %v1379, %v1382
      %v1385 = vshrl.u32 %v1370, 16
      %v1387 = vrot.slane %v1385, 3
      %v1388 = vshll.u32 %v1370, 16
      %v1390 = vrot.slane %v1388, 4
      %v1391 = vor.u32 %v1387, %v1390
      %v1392 = vsel %vm858, %v1383, %v1391
      %v1394 = vshrl.u32 %v1371, 16
      %v1396 = vrot.slane %v1394, 3
      %v1397 = vshll.u32 %v1371, 16
      %v1399 = vrot.slane %v1397, 4
      %v1400 = vor.u32 %v1396, %v1399
      %v1401 = vsel %vm858, %v1391, %v1400
      %v1403 = vshrl.u32 %v1372, 16
      %v1405 = vrot.slane %v1403, 3
      %v1406 = vshll.u32 %v1372, 16
      %v1408 = vrot.slane %v1406, 4
      %v1409 = vor.u32 %v1405, %v1408
      %v1410 = vsel %vm858, %v1400, %v1409
      %v1412 = vshrl.u32 %v1373, 16
      %v1414 = vrot.slane %v1412, 3
      %v1415 = vshll.u32 %v1373, 16
      %v1417 = vrot.slane %v1415, 4
      %v1418 = vor.u32 %v1414, %v1417
      %v1419 = vsel %vm858, %v1409, %v1418
      %v1421 = vshrl.u32 %v1374, 16
      %v1423 = vrot.slane %v1421, 3
      %v1424 = vshll.u32 %v1374, 16
      %v1426 = vrot.slane %v1424, 4
      %v1427 = vor.u32 %v1423, %v1426
      %v1428 = vsel %vm858, %v1418, %v1427
      %v1430 = vshll.u32 %v1375, 16
      %v1432 = vrot.slane %v1430, 4
      %v1433 = vsel %vm858, %v1427, %v1432
      %v1435 = vsel %vm319, %v1392, 0
      %v1438 = vsel %vm319, %v1401, 0
      %v1441 = vsel %vm319, %v1410, 0
      %v1444 = vsel %vm319, %v1419, 0
      %v1447 = vsel %vm319, %v1428, 0
      %v1450 = vsel %vm319, %v1433, 0
      %v1453 = vsel %vm338, %v1342, 0
      %1455 = vmatpush.bf16.msra.mxu0 0
      %1456 = vmatpush.bf16.msra.mxu0 0
      %1457 = vmatpush.bf16.msra.mxu0 0
      %1458 = vmatpush.bf16.msra.mxu0 0
      %1459 = vmatpush.bf16.msra.mxu0 0
      %1460 = vmatpush.bf16.msra.mxu0 0
      %1461 = vmatpush.bf16.msra.mxu0 0
      %1462 = vmatpush.bf16.msra.mxu0 %v1453
      %1463 = vmatmul.bf16.gmra.mxu0 %v1435
      %v1464 = vpop.f32.mrf.mxu0
      %v1465 = vadd.f32 0.0, %v1464
      %v1466 = vpop.f32.mrf.mxu0
      %v1467 = vadd.f32 0.0, %v1466
      %1468 = vmatmul.bf16.gmra.mxu0 %v1438
      %v1469 = vpop.f32.mrf.mxu0
      %v1470 = vadd.f32 0.0, %v1469
      %v1471 = vpop.f32.mrf.mxu0
      %v1472 = vadd.f32 0.0, %v1471
      %1473 = vmatmul.bf16.gmra.mxu0 %v1441
      %v1474 = vpop.f32.mrf.mxu0
      %v1475 = vadd.f32 0.0, %v1474
      %v1476 = vpop.f32.mrf.mxu0
      %v1477 = vadd.f32 0.0, %v1476
      %1478 = vmatmul.bf16.gmra.mxu0 %v1444
      %v1479 = vpop.f32.mrf.mxu0
      %v1480 = vadd.f32 0.0, %v1479
      %v1481 = vpop.f32.mrf.mxu0
      %v1482 = vadd.f32 0.0, %v1481
      %1483 = vmatmul.bf16.gmra.mxu0 %v1447
      %v1484 = vpop.f32.mrf.mxu0
      %v1485 = vadd.f32 0.0, %v1484
      %v1486 = vpop.f32.mrf.mxu0
      %v1487 = vadd.f32 0.0, %v1486
      %1488 = vmatmul.bf16.gmra.mxu0 %v1450
      %v1489 = vpop.f32.mrf.mxu0
      %v1490 = vadd.f32 0.0, %v1489
      %v1491 = vpop.f32.mrf.mxu0
      %v1492 = vadd.f32 0.0, %v1491
      %1493 = vdwg.mxu0
      %v1494 = vadd.f32 %v1316, %v1465
      %v1495 = vadd.f32 %v1317, %v1467
      %v1496 = vadd.f32 %v1318, %v1470
      %v1497 = vadd.f32 %v1319, %v1472
      %v1498 = vadd.f32 %v1320, %v1475
      %v1499 = vadd.f32 %v1321, %v1477
      %v1500 = vadd.f32 %v1322, %v1480
      %v1501 = vadd.f32 %v1323, %v1482
      %v1502 = vadd.f32 %v1324, %v1485
      %v1503 = vadd.f32 %v1325, %v1487
      %v1504 = vadd.f32 %v1326, %v1490
      %v1505 = vadd.f32 %v1327, %v1492
      %v1506 = vld [vmem:[%s197 + $0x30] sm:$0x7]
      %s1507 = scalar_lea.vmem %s1, 40
      %v1508 = vld [vmem:[%s1507] sm:$0xf]
      %v1510 = vunpack.c.l.b16 %v1506
      %v1511 = vpack.c.b16 %v1510, %v1237
      %v1513 = vshrl.u32 %v1239, 16
      %v1515 = vrot.slane %v1513, 1
      %v1516 = vshll.u32 %v1239, 16
      %v1518 = vrot.slane %v1516, 2
      %v1519 = vor.u32 %v1515, %v1518
      %v1521 = vshrl.u32 %v1240, 16
      %v1523 = vrot.slane %v1521, 1
      %v1524 = vshll.u32 %v1240, 16
      %v1526 = vrot.slane %v1524, 2
      %v1527 = vor.u32 %v1523, %v1526
      %v1528 = vsel %vm995, %v1519, %v1527
      %v1530 = vshrl.u32 %v1241, 16
      %v1532 = vrot.slane %v1530, 1
      %v1533 = vshll.u32 %v1241, 16
      %v1535 = vrot.slane %v1533, 2
      %v1536 = vor.u32 %v1532, %v1535
      %v1537 = vsel %vm995, %v1527, %v1536
      %v1539 = vshrl.u32 %v1242, 16
      %v1541 = vrot.slane %v1539, 1
      %v1542 = vshll.u32 %v1242, 16
      %v1544 = vrot.slane %v1542, 2
      %v1545 = vor.u32 %v1541, %v1544
      %v1546 = vsel %vm995, %v1536, %v1545
      %v1548 = vshrl.u32 %v1243, 16
      %v1550 = vrot.slane %v1548, 1
      %v1551 = vshll.u32 %v1243, 16
      %v1553 = vrot.slane %v1551, 2
      %v1554 = vor.u32 %v1550, %v1553
      %v1555 = vsel %vm995, %v1545, %v1554
      %v1557 = vshrl.u32 %v1511, 16
      %v1559 = vrot.slane %v1557, 1
      %v1560 = vshll.u32 %v1511, 16
      %v1562 = vrot.slane %v1560, 2
      %v1563 = vor.u32 %v1559, %v1562
      %v1564 = vsel %vm995, %v1554, %v1563
      %v1566 = vsel %vm319, %v1528, 0
      %v1569 = vsel %vm319, %v1537, 0
      %v1572 = vsel %vm319, %v1546, 0
      %v1575 = vsel %vm319, %v1555, 0
      %v1578 = vsel %vm319, %v1564, 0
      %v1581 = vsel %vm319, %v1563, 0
      %v1584 = vsel %vm338, %v1508, 0
      %1586 = vmatpush.bf16.msra.mxu0 0
      %1587 = vmatpush.bf16.msra.mxu0 0
      %1588 = vmatpush.bf16.msra.mxu0 0
      %1589 = vmatpush.bf16.msra.mxu0 0
      %1590 = vmatpush.bf16.msra.mxu0 0
      %1591 = vmatpush.bf16.msra.mxu0 0
      %1592 = vmatpush.bf16.msra.mxu0 0
      %1593 = vmatpush.bf16.msra.mxu0 %v1584
      %1594 = vmatmul.bf16.gmra.mxu0 %v1566
      %v1595 = vpop.f32.mrf.mxu0
      %v1596 = vadd.f32 0.0, %v1595
      %v1597 = vpop.f32.mrf.mxu0
      %v1598 = vadd.f32 0.0, %v1597
      %1599 = vmatmul.bf16.gmra.mxu0 %v1569
      %v1600 = vpop.f32.mrf.mxu0
      %v1601 = vadd.f32 0.0, %v1600
      %v1602 = vpop.f32.mrf.mxu0
      %v1603 = vadd.f32 0.0, %v1602
      %1604 = vmatmul.bf16.gmra.mxu0 %v1572
      %v1605 = vpop.f32.mrf.mxu0
      %v1606 = vadd.f32 0.0, %v1605
      %v1607 = vpop.f32.mrf.mxu0
      %v1608 = vadd.f32 0.0, %v1607
      %1609 = vmatmul.bf16.gmra.mxu0 %v1575
      %v1610 = vpop.f32.mrf.mxu0
      %v1611 = vadd.f32 0.0, %v1610
      %v1612 = vpop.f32.mrf.mxu0
      %v1613 = vadd.f32 0.0, %v1612
      %1614 = vmatmul.bf16.gmra.mxu0 %v1578
      %v1615 = vpop.f32.mrf.mxu0
      %v1616 = vadd.f32 0.0, %v1615
      %v1617 = vpop.f32.mrf.mxu0
      %v1618 = vadd.f32 0.0, %v1617
      %1619 = vmatmul.bf16.gmra.mxu0 %v1581
      %v1620 = vpop.f32.mrf.mxu0
      %v1621 = vadd.f32 0.0, %v1620
      %v1622 = vpop.f32.mrf.mxu0
      %v1623 = vadd.f32 0.0, %v1622
      %1624 = vdwg.mxu0
      %v1625 = vadd.f32 %v1494, %v1596
      %v1626 = vadd.f32 %v1495, %v1598
      %v1627 = vadd.f32 %v1496, %v1601
      %v1628 = vadd.f32 %v1497, %v1603
      %v1629 = vadd.f32 %v1498, %v1606
      %v1630 = vadd.f32 %v1499, %v1608
      %v1631 = vadd.f32 %v1500, %v1611
      %v1632 = vadd.f32 %v1501, %v1613
      %v1633 = vadd.f32 %v1502, %v1616
      %v1634 = vadd.f32 %v1503, %v1618
      %v1635 = vadd.f32 %v1504, %v1621
      %v1636 = vadd.f32 %v1505, %v1623
      %s1637 = scalar_lea.vmem %s1, 44
      %v1638 = vld [vmem:[%s1637] sm:$0xf]
      %v1639 = vpack.c.b16 %v1358, %v1357
      %v1640 = vpack.c.b16 %v1360, %v1359
      %v1641 = vpack.c.b16 %v1362, %v1361
      %v1642 = vpack.c.b16 %v1364, %v1363
      %v1643 = vpack.c.b16 %v1366, %v1365
      %v1644 = vpack.c.b16 %v1368, %v1367
      %v1646 = vsel %vm319, %v1639, 0
      %v1649 = vsel %vm319, %v1640, 0
      %v1652 = vsel %vm319, %v1641, 0
      %v1655 = vsel %vm319, %v1642, 0
      %v1658 = vsel %vm319, %v1643, 0
      %v1661 = vsel %vm319, %v1644, 0
      %v1664 = vsel %vm338, %v1638, 0
      %1666 = vmatpush.bf16.msra.mxu0 0
      %1667 = vmatpush.bf16.msra.mxu0 0
      %1668 = vmatpush.bf16.msra.mxu0 0
      %1669 = vmatpush.bf16.msra.mxu0 0
      %1670 = vmatpush.bf16.msra.mxu0 0
      %1671 = vmatpush.bf16.msra.mxu0 0
      %1672 = vmatpush.bf16.msra.mxu0 0
      %1673 = vmatpush.bf16.msra.mxu0 %v1664
      %1674 = vmatmul.bf16.gmra.mxu0 %v1646
      %v1675 = vpop.f32.mrf.mxu0
      %v1676 = vadd.f32 0.0, %v1675
      %v1677 = vpop.f32.mrf.mxu0
      %v1678 = vadd.f32 0.0, %v1677
      %1679 = vmatmul.bf16.gmra.mxu0 %v1649
      %v1680 = vpop.f32.mrf.mxu0
      %v1681 = vadd.f32 0.0, %v1680
      %v1682 = vpop.f32.mrf.mxu0
      %v1683 = vadd.f32 0.0, %v1682
      %1684 = vmatmul.bf16.gmra.mxu0 %v1652
      %v1685 = vpop.f32.mrf.mxu0
      %v1686 = vadd.f32 0.0, %v1685
      %v1687 = vpop.f32.mrf.mxu0
      %v1688 = vadd.f32 0.0, %v1687
      %1689 = vmatmul.bf16.gmra.mxu0 %v1655
      %v1690 = vpop.f32.mrf.mxu0
      %v1691 = vadd.f32 0.0, %v1690
      %v1692 = vpop.f32.mrf.mxu0
      %v1693 = vadd.f32 0.0, %v1692
      %1694 = vmatmul.bf16.gmra.mxu0 %v1658
      %v1695 = vpop.f32.mrf.mxu0
      %v1696 = vadd.f32 0.0, %v1695
      %v1697 = vpop.f32.mrf.mxu0
      %v1698 = vadd.f32 0.0, %v1697
      %1699 = vmatmul.bf16.gmra.mxu0 %v1661
      %v1700 = vpop.f32.mrf.mxu0
      %v1701 = vadd.f32 0.0, %v1700
      %v1702 = vpop.f32.mrf.mxu0
      %v1703 = vadd.f32 0.0, %v1702
      %1704 = vdwg.mxu0
      %v1705 = vadd.f32 %v1625, %v1676
      %v1706 = vadd.f32 %v1626, %v1678
      %v1707 = vadd.f32 %v1627, %v1681
      %v1708 = vadd.f32 %v1628, %v1683
      %v1709 = vadd.f32 %v1629, %v1686
      %v1710 = vadd.f32 %v1630, %v1688
      %v1711 = vadd.f32 %v1631, %v1691
      %v1712 = vadd.f32 %v1632, %v1693
      %v1713 = vadd.f32 %v1633, %v1696
      %v1714 = vadd.f32 %v1634, %v1698
      %v1715 = vadd.f32 %v1635, %v1701
      %v1716 = vadd.f32 %v1636, %v1703
      %v1717 = vld [vmem:[%s197 + $0x68] sm:$0xc]
      %v1718 = vld [vmem:[%s197 + $0x6c] sm:$0xf]
      %v1719 = vld [vmem:[%s197 + $0x70] sm:$0xf]
      %v1720 = vld [vmem:[%s197 + $0x74] sm:$0xf]
      %v1721 = vld [vmem:[%s197 + $0x78] sm:$0xf]
      %v1722 = vld [vmem:[%s197 + $0x7c] sm:$0xf]
      %v1723 = vld [vmem:[%s197 + $0x80] sm:$0xf]
      %v1724 = vld [vmem:[%s197 + $0x84] sm:$0xf]
      %v1725 = vld [vmem:[%s197 + $0x88] sm:$0xf]
      %v1726 = vld [vmem:[%s197 + $0x8c] sm:$0xf]
      %v1727 = vld [vmem:[%s197 + $0x90] sm:$0xf]
      %v1728 = vld [vmem:[%s197 + $0x94] sm:$0x7]
      %s1729 = scalar_lea.vmem %s1, 48
      %v1730 = vld [vmem:[%s1729] sm:$0xf]
      %v1743 = vunpack.c.l.b16 %v1717
      %v1744 = vunpack.c.l.b16 %v1718
      %v1745 = vunpack.c.l.b16 %v1719
      %v1746 = vunpack.c.l.b16 %v1720
      %v1747 = vunpack.c.l.b16 %v1721
      %v1748 = vunpack.c.l.b16 %v1722
      %v1749 = vunpack.c.l.b16 %v1723
      %v1750 = vunpack.c.l.b16 %v1724
      %v1751 = vunpack.c.l.b16 %v1725
      %v1752 = vunpack.c.l.b16 %v1726
      %v1753 = vunpack.c.l.b16 %v1727
      %v1754 = vunpack.c.l.b16 %v1728
      %v1755 = vpack.c.b16 %v1744, %v1743
      %v1756 = vpack.c.b16 %v1746, %v1745
      %v1757 = vpack.c.b16 %v1748, %v1747
      %v1758 = vpack.c.b16 %v1750, %v1749
      %v1759 = vpack.c.b16 %v1752, %v1751
      %v1760 = vpack.c.b16 %v1754, %v1753
      %vm1761 = vcmask 1045504
      %v1762 = vrot.slane %v1755, 2
      %v1763 = vrot.slane %v1756, 2
      %v1764 = vsel %vm1761, %v1762, %v1763
      %v1765 = vrot.slane %v1757, 2
      %v1766 = vsel %vm1761, %v1763, %v1765
      %v1767 = vrot.slane %v1758, 2
      %v1768 = vsel %vm1761, %v1765, %v1767
      %v1769 = vrot.slane %v1759, 2
      %v1770 = vsel %vm1761, %v1767, %v1769
      %v1771 = vrot.slane %v1760, 2
      %v1772 = vsel %vm1761, %v1769, %v1771
      %v1774 = vsel %vm319, %v1764, 0
      %v1777 = vsel %vm319, %v1766, 0
      %v1780 = vsel %vm319, %v1768, 0
      %v1783 = vsel %vm319, %v1770, 0
      %v1786 = vsel %vm319, %v1772, 0
      %v1789 = vsel %vm319, %v1771, 0
      %v1792 = vsel %vm338, %v1730, 0
      %1794 = vmatpush.bf16.msra.mxu0 0
      %1795 = vmatpush.bf16.msra.mxu0 0
      %1796 = vmatpush.bf16.msra.mxu0 0
      %1797 = vmatpush.bf16.msra.mxu0 0
      %1798 = vmatpush.bf16.msra.mxu0 0
      %1799 = vmatpush.bf16.msra.mxu0 0
      %1800 = vmatpush.bf16.msra.mxu0 0
      %1801 = vmatpush.bf16.msra.mxu0 %v1792
      %1802 = vmatmul.bf16.gmra.mxu0 %v1774
      %v1803 = vpop.f32.mrf.mxu0
      %v1804 = vadd.f32 0.0, %v1803
      %v1805 = vpop.f32.mrf.mxu0
      %v1806 = vadd.f32 0.0, %v1805
      %1807 = vmatmul.bf16.gmra.mxu0 %v1777
      %v1808 = vpop.f32.mrf.mxu0
      %v1809 = vadd.f32 0.0, %v1808
      %v1810 = vpop.f32.mrf.mxu0
      %v1811 = vadd.f32 0.0, %v1810
      %1812 = vmatmul.bf16.gmra.mxu0 %v1780
      %v1813 = vpop.f32.mrf.mxu0
      %v1814 = vadd.f32 0.0, %v1813
      %v1815 = vpop.f32.mrf.mxu0
      %v1816 = vadd.f32 0.0, %v1815
      %1817 = vmatmul.bf16.gmra.mxu0 %v1783
      %v1818 = vpop.f32.mrf.mxu0
      %v1819 = vadd.f32 0.0, %v1818
      %v1820 = vpop.f32.mrf.mxu0
      %v1821 = vadd.f32 0.0, %v1820
      %1822 = vmatmul.bf16.gmra.mxu0 %v1786
      %v1823 = vpop.f32.mrf.mxu0
      %v1824 = vadd.f32 0.0, %v1823
      %v1825 = vpop.f32.mrf.mxu0
      %v1826 = vadd.f32 0.0, %v1825
      %1827 = vmatmul.bf16.gmra.mxu0 %v1789
      %v1828 = vpop.f32.mrf.mxu0
      %v1829 = vadd.f32 0.0, %v1828
      %v1830 = vpop.f32.mrf.mxu0
      %v1831 = vadd.f32 0.0, %v1830
      %1832 = vdwg.mxu0
      %v1833 = vadd.f32 %v1705, %v1804
      %v1834 = vadd.f32 %v1706, %v1806
      %v1835 = vadd.f32 %v1707, %v1809
      %v1836 = vadd.f32 %v1708, %v1811
      %v1837 = vadd.f32 %v1709, %v1814
      %v1838 = vadd.f32 %v1710, %v1816
      %v1839 = vadd.f32 %v1711, %v1819
      %v1840 = vadd.f32 %v1712, %v1821
      %v1841 = vadd.f32 %v1713, %v1824
      %v1842 = vadd.f32 %v1714, %v1826
      %v1843 = vadd.f32 %v1715, %v1829
      %v1844 = vadd.f32 %v1716, %v1831
      %v1845 = vld [vmem:[%s197 + $0x9c] sm:$0xf]
      %v1846 = vld [vmem:[%s197 + $0xa0] sm:$0xf]
      %v1847 = vld [vmem:[%s197 + $0xa4] sm:$0xf]
      %v1848 = vld [vmem:[%s197 + $0xa8] sm:$0xf]
      %v1849 = vld [vmem:[%s197 + $0xac] sm:$0xf]
      %v1850 = vld [vmem:[%s197 + $0xb0] sm:$0xf]
      %v1851 = vld [vmem:[%s197 + $0xb4] sm:$0xf]
      %v1852 = vld [vmem:[%s197 + $0xb8] sm:$0xf]
      %v1853 = vld [vmem:[%s197 + $0xbc] sm:$0xf]
      %v1854 = vld [vmem:[%s197 + $0xc0] sm:$0xf]
      %v1855 = vld [vmem:[%s197 + $0xc4] sm:$0xf]
      %v1856 = vld [vmem:[%s197 + $0xc8] sm:$0x3]
      %s1857 = scalar_lea.vmem %s1, 52
      %v1858 = vld [vmem:[%s1857] sm:$0xf]
      %v1871 = vunpack.c.l.b16 %v1845
      %v1872 = vunpack.c.l.b16 %v1846
      %v1873 = vunpack.c.l.b16 %v1847
      %v1874 = vunpack.c.l.b16 %v1848
      %v1875 = vunpack.c.l.b16 %v1849
      %v1876 = vunpack.c.l.b16 %v1850
      %v1877 = vunpack.c.l.b16 %v1851
      %v1878 = vunpack.c.l.b16 %v1852
      %v1879 = vunpack.c.l.b16 %v1853
      %v1880 = vunpack.c.l.b16 %v1854
      %v1881 = vunpack.c.l.b16 %v1855
      %v1882 = vunpack.c.l.b16 %v1856
      %v1883 = vpack.c.b16 %v1872, %v1871
      %v1884 = vpack.c.b16 %v1874, %v1873
      %v1885 = vpack.c.b16 %v1876, %v1875
      %v1886 = vpack.c.b16 %v1878, %v1877
      %v1887 = vpack.c.b16 %v1880, %v1879
      %v1888 = vpack.c.b16 %v1882, %v1881
      %v1890 = vshrl.u32 %v1883, 16
      %v1892 = vshll.u32 %v1883, 16
      %v1894 = vrot.slane %v1892, 1
      %v1895 = vor.u32 %v1890, %v1894
      %v1897 = vshll.u32 %v1884, 16
      %v1899 = vrot.slane %v1897, 1
      %v1900 = vsel %vm477, %v1895, %v1899
      %v1901 = vshrl.u32 %v1884, 16
      %v1903 = vor.u32 %v1901, %v1899
      %v1905 = vshll.u32 %v1885, 16
      %v1907 = vrot.slane %v1905, 1
      %v1908 = vsel %vm477, %v1903, %v1907
      %v1909 = vshrl.u32 %v1885, 16
      %v1911 = vor.u32 %v1909, %v1907
      %v1913 = vshll.u32 %v1886, 16
      %v1915 = vrot.slane %v1913, 1
      %v1916 = vsel %vm477, %v1911, %v1915
      %v1917 = vshrl.u32 %v1886, 16
      %v1919 = vor.u32 %v1917, %v1915
      %v1921 = vshll.u32 %v1887, 16
      %v1923 = vrot.slane %v1921, 1
      %v1924 = vsel %vm477, %v1919, %v1923
      %v1925 = vshrl.u32 %v1887, 16
      %v1927 = vor.u32 %v1925, %v1923
      %v1929 = vshll.u32 %v1888, 16
      %v1931 = vrot.slane %v1929, 1
      %v1932 = vsel %vm477, %v1927, %v1931
      %v1933 = vshrl.u32 %v1888, 16
      %v1935 = vor.u32 %v1933, %v1931
      %v1937 = vsel %vm319, %v1900, 0
      %v1940 = vsel %vm319, %v1908, 0
      %v1943 = vsel %vm319, %v1916, 0
      %v1946 = vsel %vm319, %v1924, 0
      %v1949 = vsel %vm319, %v1932, 0
      %v1952 = vsel %vm319, %v1935, 0
      %v1955 = vsel %vm338, %v1858, 0
      %1957 = vmatpush.bf16.msra.mxu0 0
      %1958 = vmatpush.bf16.msra.mxu0 0
      %1959 = vmatpush.bf16.msra.mxu0 0
      %1960 = vmatpush.bf16.msra.mxu0 0
      %1961 = vmatpush.bf16.msra.mxu0 0
      %1962 = vmatpush.bf16.msra.mxu0 0
      %1963 = vmatpush.bf16.msra.mxu0 0
      %1964 = vmatpush.bf16.msra.mxu0 %v1955
      %1965 = vmatmul.bf16.gmra.mxu0 %v1937
      %v1966 = vpop.f32.mrf.mxu0
      %v1967 = vadd.f32 0.0, %v1966
      %v1968 = vpop.f32.mrf.mxu0
      %v1969 = vadd.f32 0.0, %v1968
      %1970 = vmatmul.bf16.gmra.mxu0 %v1940
      %v1971 = vpop.f32.mrf.mxu0
      %v1972 = vadd.f32 0.0, %v1971
      %v1973 = vpop.f32.mrf.mxu0
      %v1974 = vadd.f32 0.0, %v1973
      %1975 = vmatmul.bf16.gmra.mxu0 %v1943
      %v1976 = vpop.f32.mrf.mxu0
      %v1977 = vadd.f32 0.0, %v1976
      %v1978 = vpop.f32.mrf.mxu0
      %v1979 = vadd.f32 0.0, %v1978
      %1980 = vmatmul.bf16.gmra.mxu0 %v1946
      %v1981 = vpop.f32.mrf.mxu0
      %v1982 = vadd.f32 0.0, %v1981
      %v1983 = vpop.f32.mrf.mxu0
      %v1984 = vadd.f32 0.0, %v1983
      %1985 = vmatmul.bf16.gmra.mxu0 %v1949
      %v1986 = vpop.f32.mrf.mxu0
      %v1987 = vadd.f32 0.0, %v1986
      %v1988 = vpop.f32.mrf.mxu0
      %v1989 = vadd.f32 0.0, %v1988
      %1990 = vmatmul.bf16.gmra.mxu0 %v1952
      %v1991 = vpop.f32.mrf.mxu0
      %v1992 = vadd.f32 0.0, %v1991
      %v1993 = vpop.f32.mrf.mxu0
      %v1994 = vadd.f32 0.0, %v1993
      %1995 = vdwg.mxu0
      %v1996 = vadd.f32 %v1833, %v1967
      %v1997 = vadd.f32 %v1834, %v1969
      %v1998 = vadd.f32 %v1835, %v1972
      %v1999 = vadd.f32 %v1836, %v1974
      %v2000 = vadd.f32 %v1837, %v1977
      %v2001 = vadd.f32 %v1838, %v1979
      %v2002 = vadd.f32 %v1839, %v1982
      %v2003 = vadd.f32 %v1840, %v1984
      %v2004 = vadd.f32 %v1841, %v1987
      %v2005 = vadd.f32 %v1842, %v1989
      %v2006 = vadd.f32 %v1843, %v1992
      %v2007 = vadd.f32 %v1844, %v1994
      %v2008 = vld [vmem:[%s197 + $0x94] sm:$0xf]
      %s2009 = scalar_lea.vmem %s1, 56
      %v2010 = vld [vmem:[%s2009] sm:$0xf]
      %v2012 = vunpack.c.l.b16 %v2008
      %v2013 = vpack.c.b16 %v2012, %v1753
      %v2015 = vshrl.u32 %v1755, 16
      %v2017 = vrot.slane %v2015, 2
      %v2018 = vshll.u32 %v1755, 16
      %v2020 = vrot.slane %v2018, 3
      %v2021 = vor.u32 %v2017, %v2020
      %v2023 = vshrl.u32 %v1756, 16
      %v2025 = vrot.slane %v2023, 2
      %v2026 = vshll.u32 %v1756, 16
      %v2028 = vrot.slane %v2026, 3
      %v2029 = vor.u32 %v2025, %v2028
      %v2030 = vsel %vm265, %v2021, %v2029
      %v2032 = vshrl.u32 %v1757, 16
      %v2034 = vrot.slane %v2032, 2
      %v2035 = vshll.u32 %v1757, 16
      %v2037 = vrot.slane %v2035, 3
      %v2038 = vor.u32 %v2034, %v2037
      %v2039 = vsel %vm265, %v2029, %v2038
      %v2041 = vshrl.u32 %v1758, 16
      %v2043 = vrot.slane %v2041, 2
      %v2044 = vshll.u32 %v1758, 16
      %v2046 = vrot.slane %v2044, 3
      %v2047 = vor.u32 %v2043, %v2046
      %v2048 = vsel %vm265, %v2038, %v2047
      %v2050 = vshrl.u32 %v1759, 16
      %v2052 = vrot.slane %v2050, 2
      %v2053 = vshll.u32 %v1759, 16
      %v2055 = vrot.slane %v2053, 3
      %v2056 = vor.u32 %v2052, %v2055
      %v2057 = vsel %vm265, %v2047, %v2056
      %v2059 = vshrl.u32 %v2013, 16
      %v2061 = vrot.slane %v2059, 2
      %v2062 = vshll.u32 %v2013, 16
      %v2064 = vrot.slane %v2062, 3
      %v2065 = vor.u32 %v2061, %v2064
      %v2066 = vsel %vm265, %v2056, %v2065
      %v2068 = vsel %vm319, %v2030, 0
      %v2071 = vsel %vm319, %v2039, 0
      %v2074 = vsel %vm319, %v2048, 0
      %v2077 = vsel %vm319, %v2057, 0
      %v2080 = vsel %vm319, %v2066, 0
      %v2083 = vsel %vm319, %v2065, 0
      %v2086 = vsel %vm338, %v2010, 0
      %2088 = vmatpush.bf16.msra.mxu0 0
      %2089 = vmatpush.bf16.msra.mxu0 0
      %2090 = vmatpush.bf16.msra.mxu0 0
      %2091 = vmatpush.bf16.msra.mxu0 0
      %2092 = vmatpush.bf16.msra.mxu0 0
      %2093 = vmatpush.bf16.msra.mxu0 0
      %2094 = vmatpush.bf16.msra.mxu0 0
      %2095 = vmatpush.bf16.msra.mxu0 %v2086
      %2096 = vmatmul.bf16.gmra.mxu0 %v2068
      %v2097 = vpop.f32.mrf.mxu0
      %v2098 = vadd.f32 0.0, %v2097
      %v2099 = vpop.f32.mrf.mxu0
      %v2100 = vadd.f32 0.0, %v2099
      %2101 = vmatmul.bf16.gmra.mxu0 %v2071
      %v2102 = vpop.f32.mrf.mxu0
      %v2103 = vadd.f32 0.0, %v2102
      %v2104 = vpop.f32.mrf.mxu0
      %v2105 = vadd.f32 0.0, %v2104
      %2106 = vmatmul.bf16.gmra.mxu0 %v2074
      %v2107 = vpop.f32.mrf.mxu0
      %v2108 = vadd.f32 0.0, %v2107
      %v2109 = vpop.f32.mrf.mxu0
      %v2110 = vadd.f32 0.0, %v2109
      %2111 = vmatmul.bf16.gmra.mxu0 %v2077
      %v2112 = vpop.f32.mrf.mxu0
      %v2113 = vadd.f32 0.0, %v2112
      %v2114 = vpop.f32.mrf.mxu0
      %v2115 = vadd.f32 0.0, %v2114
      %2116 = vmatmul.bf16.gmra.mxu0 %v2080
      %v2117 = vpop.f32.mrf.mxu0
      %v2118 = vadd.f32 0.0, %v2117
      %v2119 = vpop.f32.mrf.mxu0
      %v2120 = vadd.f32 0.0, %v2119
      %2121 = vmatmul.bf16.gmra.mxu0 %v2083
      %v2122 = vpop.f32.mrf.mxu0
      %v2123 = vadd.f32 0.0, %v2122
      %v2124 = vpop.f32.mrf.mxu0
      %v2125 = vadd.f32 0.0, %v2124
      %2126 = vdwg.mxu0
      %v2127 = vadd.f32 %v1996, %v2098
      %v2128 = vadd.f32 %v1997, %v2100
      %v2129 = vadd.f32 %v1998, %v2103
      %v2130 = vadd.f32 %v1999, %v2105
      %v2131 = vadd.f32 %v2000, %v2108
      %v2132 = vadd.f32 %v2001, %v2110
      %v2133 = vadd.f32 %v2002, %v2113
      %v2134 = vadd.f32 %v2003, %v2115
      %v2135 = vadd.f32 %v2004, %v2118
      %v2136 = vadd.f32 %v2005, %v2120
      %v2137 = vadd.f32 %v2006, %v2123
      %v2138 = vadd.f32 %v2007, %v2125
      %v2139 = vld [vmem:[%s197 + $0x9c] sm:$0xe]
      %s2140 = scalar_lea.vmem %s1, 60
      %v2141 = vld [vmem:[%s2140] sm:$0xf]
      %v2143 = vunpack.c.l.b16 %v2139
      %v2144 = vpack.c.b16 %v1872, %v2143
      %v2145 = vrot.slane %v2144, 1
      %v2146 = vrot.slane %v1884, 1
      %v2147 = vsel %vm726, %v2145, %v2146
      %v2148 = vrot.slane %v1885, 1
      %v2149 = vsel %vm726, %v2146, %v2148
      %v2150 = vrot.slane %v1886, 1
      %v2151 = vsel %vm726, %v2148, %v2150
      %v2152 = vrot.slane %v1887, 1
      %v2153 = vsel %vm726, %v2150, %v2152
      %v2154 = vrot.slane %v1888, 1
      %v2155 = vsel %vm726, %v2152, %v2154
      %v2157 = vsel %vm319, %v2147, 0
      %v2160 = vsel %vm319, %v2149, 0
      %v2163 = vsel %vm319, %v2151, 0
      %v2166 = vsel %vm319, %v2153, 0
      %v2169 = vsel %vm319, %v2155, 0
      %v2172 = vsel %vm319, %v2154, 0
      %v2175 = vsel %vm338, %v2141, 0
      %2177 = vmatpush.bf16.msra.mxu0 0
      %2178 = vmatpush.bf16.msra.mxu0 0
      %2179 = vmatpush.bf16.msra.mxu0 0
      %2180 = vmatpush.bf16.msra.mxu0 0
      %2181 = vmatpush.bf16.msra.mxu0 0
      %2182 = vmatpush.bf16.msra.mxu0 0
      %2183 = vmatpush.bf16.msra.mxu0 0
      %2184 = vmatpush.bf16.msra.mxu0 %v2175
      %2185 = vmatmul.bf16.gmra.mxu0 %v2157
      %v2186 = vpop.f32.mrf.mxu0
      %v2187 = vadd.f32 0.0, %v2186
      %v2188 = vpop.f32.mrf.mxu0
      %v2189 = vadd.f32 0.0, %v2188
      %2190 = vmatmul.bf16.gmra.mxu0 %v2160
      %v2191 = vpop.f32.mrf.mxu0
      %v2192 = vadd.f32 0.0, %v2191
      %v2193 = vpop.f32.mrf.mxu0
      %v2194 = vadd.f32 0.0, %v2193
      %2195 = vmatmul.bf16.gmra.mxu0 %v2163
      %v2196 = vpop.f32.mrf.mxu0
      %v2197 = vadd.f32 0.0, %v2196
      %v2198 = vpop.f32.mrf.mxu0
      %v2199 = vadd.f32 0.0, %v2198
      %2200 = vmatmul.bf16.gmra.mxu0 %v2166
      %v2201 = vpop.f32.mrf.mxu0
      %v2202 = vadd.f32 0.0, %v2201
      %v2203 = vpop.f32.mrf.mxu0
      %v2204 = vadd.f32 0.0, %v2203
      %2205 = vmatmul.bf16.gmra.mxu0 %v2169
      %v2206 = vpop.f32.mrf.mxu0
      %v2207 = vadd.f32 0.0, %v2206
      %v2208 = vpop.f32.mrf.mxu0
      %v2209 = vadd.f32 0.0, %v2208
      %2210 = vmatmul.bf16.gmra.mxu0 %v2172
      %v2211 = vpop.f32.mrf.mxu0
      %v2212 = vadd.f32 0.0, %v2211
      %v2213 = vpop.f32.mrf.mxu0
      %v2214 = vadd.f32 0.0, %v2213
      %2215 = vdwg.mxu0
      %v2216 = vadd.f32 %v2127, %v2187
      %v2217 = vadd.f32 %v2128, %v2189
      %v2218 = vadd.f32 %v2129, %v2192
      %v2219 = vadd.f32 %v2130, %v2194
      %v2220 = vadd.f32 %v2131, %v2197
      %v2221 = vadd.f32 %v2132, %v2199
      %v2222 = vadd.f32 %v2133, %v2202
      %v2223 = vadd.f32 %v2134, %v2204
      %v2224 = vadd.f32 %v2135, %v2207
      %v2225 = vadd.f32 %v2136, %v2209
      %v2226 = vadd.f32 %v2137, %v2212
      %v2227 = vadd.f32 %v2138, %v2214
      %v2228 = vld [vmem:[%s2] sm:$0x1]
      %v2230 = vperm.slane %v2228, 0
      %v2232 = vadd.f32 %v2216, %v2230
      %v2233 = vadd.f32 %v2217, %v2230
      %v2234 = vadd.f32 %v2218, %v2230
      %v2235 = vadd.f32 %v2219, %v2230
      %v2236 = vadd.f32 %v2220, %v2230
      %v2237 = vadd.f32 %v2221, %v2230
      %v2238 = vadd.f32 %v2222, %v2230
      %v2239 = vadd.f32 %v2223, %v2230
      %v2240 = vadd.f32 %v2224, %v2230
      %v2241 = vadd.f32 %v2225, %v2230
      %v2242 = vadd.f32 %v2226, %v2230
      %v2243 = vadd.f32 %v2227, %v2230
      %vm2244 = vcmp.ge.f32.partialorder %v2232, 0.0
      %vm2245 = vcmp.ge.f32.partialorder %v2233, 0.0
      %vm2246 = vcmp.ge.f32.partialorder %v2234, 0.0
      %vm2247 = vcmp.ge.f32.partialorder %v2235, 0.0
      %vm2248 = vcmp.ge.f32.partialorder %v2236, 0.0
      %vm2249 = vcmp.ge.f32.partialorder %v2237, 0.0
      %vm2250 = vcmp.ge.f32.partialorder %v2238, 0.0
      %vm2251 = vcmp.ge.f32.partialorder %v2239, 0.0
      %vm2252 = vcmp.ge.f32.partialorder %v2240, 0.0
      %vm2253 = vcmp.ge.f32.partialorder %v2241, 0.0
      %vm2254 = vcmp.ge.f32.partialorder %v2242, 0.0
      %vm2255 = vcmp.ge.f32.partialorder %v2243, 0.0
      %v2256 = vmul.f32 %v2232, 0.2
      %v2257 = vmul.f32 %v2233, 0.2
      %v2258 = vmul.f32 %v2234, 0.2
      %v2259 = vmul.f32 %v2235, 0.2
      %v2260 = vmul.f32 %v2236, 0.2
      %v2261 = vmul.f32 %v2237, 0.2
      %v2262 = vmul.f32 %v2238, 0.2
      %v2263 = vmul.f32 %v2239, 0.2
      %v2264 = vmul.f32 %v2240, 0.2
      %v2265 = vmul.f32 %v2241, 0.2
      %v2266 = vmul.f32 %v2242, 0.2
      %v2267 = vmul.f32 %v2243, 0.2
      %v2268 = vsel %vm2244, %v2232, %v2256
      %v2269 = vsel %vm2245, %v2233, %v2257
      %v2270 = vsel %vm2246, %v2234, %v2258
      %v2271 = vsel %vm2247, %v2235, %v2259
      %v2272 = vsel %vm2248, %v2236, %v2260
      %v2273 = vsel %vm2249, %v2237, %v2261
      %v2274 = vsel %vm2250, %v2238, %v2262
      %v2275 = vsel %vm2251, %v2239, %v2263
      %v2276 = vsel %vm2252, %v2240, %v2264
      %v2277 = vsel %vm2253, %v2241, %v2265
      %v2278 = vsel %vm2254, %v2242, %v2266
      %v2279 = vsel %vm2255, %v2243, %v2267
      %v2280 = vpack.c.bf16 %v2268, %v2268
      %v2281 = vpack.c.bf16 %v2269, %v2269
      %v2282 = vpack.c.bf16 %v2270, %v2270
      %v2283 = vpack.c.bf16 %v2271, %v2271
      %v2284 = vpack.c.bf16 %v2272, %v2272
      %v2285 = vpack.c.bf16 %v2273, %v2273
      %v2286 = vpack.c.bf16 %v2274, %v2274
      %v2287 = vpack.c.bf16 %v2275, %v2275
      %v2288 = vpack.c.bf16 %v2276, %v2276
      %v2289 = vpack.c.bf16 %v2277, %v2277
      %v2290 = vpack.c.bf16 %v2278, %v2278
      %v2291 = vpack.c.bf16 %v2279, %v2279
      %vm2292 = vcmask 125952
      %2293 = vst.msk [vmem:[%s206] sm:$0xf] %vm2292, %v2280
      %2294 = vst.msk [vmem:[%s206 + $0x4] sm:$0xf] %vm2292, %v2281
      %2295 = vst.msk [vmem:[%s206 + $0x8] sm:$0xf] %vm2292, %v2282
      %2296 = vst.msk [vmem:[%s206 + $0xc] sm:$0xf] %vm2292, %v2283
      %2297 = vst.msk [vmem:[%s206 + $0x10] sm:$0xf] %vm2292, %v2284
      %2298 = vst.msk [vmem:[%s206 + $0x14] sm:$0xf] %vm2292, %v2285
      %2299 = vst.msk [vmem:[%s206 + $0x18] sm:$0xf] %vm2292, %v2286
      %2300 = vst.msk [vmem:[%s206 + $0x1c] sm:$0xf] %vm2292, %v2287
      %2301 = vst.msk [vmem:[%s206 + $0x20] sm:$0xf] %vm2292, %v2288
      %2302 = vst.msk [vmem:[%s206 + $0x24] sm:$0xf] %vm2292, %v2289
      %2303 = vst.msk [vmem:[%s206 + $0x28] sm:$0xf] %vm2292, %v2290
      %vm2304 = vcmask 122880
      %2305 = vst.msk [vmem:[%s206 + $0x2c] sm:$0x1] %vm2304, %v2291
      %p2306 = scmp.lt.s32.totalorder %s18, 1
      %s2307 = scalar_select %p2306, %s18, 1
      %p2308 = scmp.lt.s32.totalorder %s19, 0
      %s2309 = scalar_select %p2308, %s19, 0
      %s2310 = smul.addr %s2309, 12
      %s2311 = smul.addr %s2307, 12
      %s2312 = sadd.s32 %s2310, %s2311
      %s2313 = smul.addr %s2312, 4
      %s2314 = scalar_lea.vmem %s3, %s2313
      // Predicated region
      $region33: #{tpu_custom_call.1} parent=31 // pred_check
        %p2315 = pneg %p116
      $region34: #{tpu_custom_call.1} parent=31 // pred_check_branch
        %2317 = sbr.rel (%p2315) target = $region36
      $region35: #{tpu_custom_call.1} parent=31 // pred_region
        _
      $region36: #{tpu_custom_call.1} parent=31 // pred_fallthru
        _
    $region32: #{tpu_custom_call.1} parent=5 // pred_fallthru
      _
    %p2318 = scmp.le.s32.totalorder 2, %s9
    // Predicated region
    $region37: #{tpu_custom_call.1} parent=5 // pred_check
      %p2319 = pneg %p2318
    $region38: #{tpu_custom_call.1} parent=5 // pred_check_branch
      %2321 = sbr.rel (%p2319) target = $region40
    $region39: #{tpu_custom_call.1} parent=5 // pred_region
      %s2322 = ssub.s32 %s9, 2
      // Predicated region
      $region41: #{tpu_custom_call.1} parent=39 // pred_check
        %p2323 = pneg %p122
      $region42: #{tpu_custom_call.1} parent=39 // pred_check_branch
        %2325 = sbr.rel (%p2323) target = $region44
      $region43: #{tpu_custom_call.1} parent=39 // pred_region
        %p2326 = scmp.lt.s32.totalorder %s20, 1
        %s2327 = scalar_select %p2326, %s20, 1
        %p2328 = scmp.lt.s32.totalorder %s21, 0
        %s2329 = scalar_select %p2328, %s21, 0
        %s2330 = smul.addr %s2329, 12
        %s2331 = smul.addr %s2327, 12
        %s2332 = sadd.s32 %s2330, %s2331
        %s2333 = smul.addr %s2332, 4
        %s2334 = scalar_lea.vmem %s3, %s2333
      $region44: #{tpu_custom_call.1} parent=39 // pred_fallthru
        _
    $region40: #{tpu_custom_call.1} parent=5 // pred_fallthru
      _
  $region6: #{tpu_custom_call.1} parent=0 // loop_footer
    %s13 = sadd.s32 1, %s9
  $region7: #{tpu_custom_call.1} parent=0 // loop_footer_branch
    %8 = sbr.rel target = $region3
  $region8: #{tpu_custom_call.1} parent=0 // loop_exit
    _

</llo_original>
